<compile_context>
chip_gen: v6e
topology: v6e:2x2x1
jax: 0.10.0
libtpu: 0.0.40
codegen_flags: <defaults>
</compile_context>

<pallas_src>
import functools
import math

import jax
import jax.numpy as jnp
from jax.experimental import pallas as pl
from jax.experimental.pallas import tpu as pltpu


# ------------------------------------------------------------------ fused attention kernel

def attn_block_kernel(x_ref, cos_ref, sin_ref, nw_ref,
                      qa_w_ref, qa_b_ref, qb_w_ref, qb_b_ref,
                      kva_w_ref, kva_b_ref, kvb_w_ref, kvb_b_ref,
                      out_w_ref, out_b_ref, o_ref, *,
                      num_heads, nope, rope, vdim, kv_lora, scale, eps):
    """One batch element: residual + out_proj(MLA(rmsnorm(x))), everything VMEM-resident."""
    x = x_ref[0].astype(jnp.float32)                                   # (S, H)

    # --- RMSNorm (f32) ---
    ms = jnp.mean(x * x, axis=-1, keepdims=True)
    h = x * jax.lax.rsqrt(ms + eps) * nw_ref[...].astype(jnp.float32)
    h_b = h.astype(jnp.bfloat16)

    # --- low-rank q / kv projections (bf16 MXU inputs, f32 accumulation) ---
    q_a = jnp.dot(h_b, qa_w_ref[...], preferred_element_type=jnp.float32) + qa_b_ref[...]
    q = jnp.dot(q_a.astype(jnp.bfloat16), qb_w_ref[...],
                preferred_element_type=jnp.float32) + qb_b_ref[...]    # (S, Hh*qk_dim)
    kv_a = jnp.dot(h_b, kva_w_ref[...], preferred_element_type=jnp.float32) + kva_b_ref[...]
    kv_c = kv_a[:, :kv_lora]                                           # (S, kv_lora)
    k_r = kv_a[:, kv_lora:]                                            # (S, rope)
    kv = jnp.dot(kv_c.astype(jnp.bfloat16), kvb_w_ref[...],
                 preferred_element_type=jnp.float32) + kvb_b_ref[...]  # (S, Hh*(nope+v))

    cosf = cos_ref[...]                                                # (S, rope), halves duplicated
    sinf = sin_ref[...]

    def rope_rotate(t):                                                # rotate-half RoPE, in-kernel
        half = rope // 2
        t1 = t[:, :half]
        t2 = t[:, half:]
        tr = jnp.concatenate([-t2, t1], axis=-1)
        return t * cosf + tr * sinf

    k_rope = rope_rotate(k_r)                                          # shared across heads

    qk_dim = nope + rope
    head_outs = []
    for hd in range(num_heads):                                        # static unroll (small Hh)
        qh = q[:, hd * qk_dim:(hd + 1) * qk_dim]
        qi = jnp.concatenate([qh[:, :nope], rope_rotate(qh[:, nope:])], axis=-1)
        kvh = kv[:, hd * (nope + vdim):(hd + 1) * (nope + vdim)]
        ki = jnp.concatenate([kvh[:, :nope], k_rope], axis=-1)
        vh = kvh[:, nope:]
        s = jnp.dot(qi, ki.T, preferred_element_type=jnp.float32) * scale    # (S, S)
        m = jnp.max(s, axis=-1, keepdims=True)
        p = jnp.exp(s - m)
        p = p * pl.reciprocal(jnp.sum(p, axis=-1, keepdims=True), approx=True)
        head_outs.append(jnp.dot(p, vh, preferred_element_type=jnp.float32))  # (S, v)
    attn = jnp.concatenate(head_outs, axis=-1)                          # (S, Hh*v)

    out = jnp.dot(attn.astype(jnp.bfloat16), out_w_ref[...],
                  preferred_element_type=jnp.float32) + out_b_ref[...]
    # dropout == identity (eval mode); residual add fused here
    o_ref[0] = (x + out).astype(o_ref.dtype)


# ------------------------------------------------------------------ fused MoE kernel

def moe_block_kernel(x_ref, nw_ref, rw_ref, rb_ref,
                     ew1_ref, ew3_ref, ew2_ref,
                     sw1_ref, sw3_ref, sw2_ref, o_ref, *,
                     num_experts, top_k, eps):
    """One batch element: residual + MoE(rmsnorm(x)), everything VMEM-resident."""
    x = x_ref[0].astype(jnp.float32)                                   # (S, H)

    # --- RMSNorm (f32) ---
    ms = jnp.mean(x * x, axis=-1, keepdims=True)
    h = x * jax.lax.rsqrt(ms + eps) * nw_ref[...].astype(jnp.float32)
    h_b = h.astype(jnp.bfloat16)

    # --- router + softmax + top-k gating (in-kernel, f32) ---
    logits = (jnp.dot(h_b, rw_ref[...], preferred_element_type=jnp.float32)
              + rb_ref[...])                                            # (S, E)
    lmax = jnp.max(logits, axis=-1, keepdims=True)
    le = jnp.exp(logits - lmax)
    probs = le / jnp.sum(le, axis=-1, keepdims=True)

    col = jax.lax.broadcasted_iota(jnp.int32, probs.shape, 1)
    rem = probs
    mask = jnp.zeros_like(probs)
    for _ in range(top_k):                                              # argmax-free top-k
        m = jnp.max(rem, axis=-1, keepdims=True)
        hit = rem >= m
        first = jnp.min(jnp.where(hit, col, num_experts), axis=-1, keepdims=True)
        oh = (col == first).astype(probs.dtype)
        mask = mask + oh
        rem = jnp.where(oh > 0, -jnp.inf, rem)
    topv = probs * mask
    gates = topv / jnp.sum(topv, axis=-1, keepdims=True)                # (S, E)

    def swiglu(xb, w1, w3, w2):
        h1 = jnp.dot(xb, w1, preferred_element_type=jnp.float32)
        h3 = jnp.dot(xb, w3, preferred_element_type=jnp.float32)
        g = (h1 * jax.nn.sigmoid(h1)) * h3                              # SiLU(w1 x) * (w3 x), f32
        return jnp.dot(g.astype(jnp.bfloat16), w2, preferred_element_type=jnp.float32)

    # shared expert (always active)
    acc = swiglu(h_b, sw1_ref[...], sw3_ref[...], sw2_ref[...])

    # routed experts; dense at E=4 (gate==0 contributes exactly 0)
    # TODO(synk): at realistic expert counts, skip inactive experts with a scalar-prefetched
    # per-(batch, expert) mask + pl.when, or token-grouped index_maps (PrefetchScalarGridSpec).
    for e in range(num_experts):
        acc = acc + gates[:, e:e + 1] * swiglu(h_b, ew1_ref[e], ew3_ref[e], ew2_ref[e])

    # dropout == identity (eval mode); residual add fused here
    o_ref[0] = (x + acc).astype(o_ref.dtype)


# ------------------------------------------------------------------ wrappers

def _rep_spec(shape):
    """Full-array block, same block for every grid step (stays resident, no re-DMA)."""
    zeros = (0,) * len(shape)
    return pl.BlockSpec(shape, lambda b: zeros)


def pallas_attention_block(x, cos_full, sin_full, params, cfg):
    B, S, H = x.shape
    Hh = cfg.num_heads
    nope, rope, vdim = cfg.qk_nope_head_dim, cfg.qk_rope_head_dim, cfg.v_head_dim
    qk_dim = nope + rope
    kv_a_out = cfg.kv_lora_rank + rope
    kv_b_out = Hh * (nope + vdim)
    scale = cfg.attention_scale_factor / math.sqrt(qk_dim)

    kernel = functools.partial(
        attn_block_kernel, num_heads=Hh, nope=nope, rope=rope, vdim=vdim,
        kv_lora=cfg.kv_lora_rank, scale=scale, eps=cfg.rms_eps)

    return pl.pallas_call(
        kernel,
        grid=(B,),
        in_specs=[
            pl.BlockSpec((1, S, H), lambda b: (b, 0, 0)),
            _rep_spec((S, rope)), _rep_spec((S, rope)),
            _rep_spec((1, H)),
            _rep_spec((H, cfg.q_lora_rank)), _rep_spec((1, cfg.q_lora_rank)),
            _rep_spec((cfg.q_lora_rank, Hh * qk_dim)), _rep_spec((1, Hh * qk_dim)),
            _rep_spec((H, kv_a_out)), _rep_spec((1, kv_a_out)),
            _rep_spec((cfg.kv_lora_rank, kv_b_out)), _rep_spec((1, kv_b_out)),
            _rep_spec((Hh * vdim, H)), _rep_spec((1, H)),
        ],
        out_specs=pl.BlockSpec((1, S, H), lambda b: (b, 0, 0)),
        out_shape=jax.ShapeDtypeStruct((B, S, H), jnp.float32),
        compiler_params=pltpu.CompilerParams(dimension_semantics=("parallel",)),
    )(x, cos_full, sin_full, params["attn_norm_w"],
      params["q_a_w"], params["q_a_b"], params["q_b_w"], params["q_b_b"],
      params["kv_a_w"], params["kv_a_b"], params["kv_b_w"], params["kv_b_b"],
      params["out_w"], params["out_b"])


def pallas_moe_block(x, params, cfg):
    B, S, H = x.shape
    E, I, Is = cfg.num_experts, cfg.moe_intermediate_size, cfg.shared_intermediate_size

    kernel = functools.partial(
        moe_block_kernel, num_experts=E, top_k=cfg.num_experts_per_token, eps=cfg.rms_eps)

    return pl.pallas_call(
        kernel,
        grid=(B,),
        in_specs=[
            pl.BlockSpec((1, S, H), lambda b: (b, 0, 0)),
            _rep_spec((1, H)),
            _rep_spec((H, E)), _rep_spec((1, E)),
            _rep_spec((E, H, I)), _rep_spec((E, H, I)), _rep_spec((E, I, H)),
            _rep_spec((H, Is)), _rep_spec((H, Is)), _rep_spec((Is, H)),
        ],
        out_specs=pl.BlockSpec((1, S, H), lambda b: (b, 0, 0)),
        out_shape=jax.ShapeDtypeStruct((B, S, H), jnp.float32),
        compiler_params=pltpu.CompilerParams(dimension_semantics=("parallel",)),
    )(x, params["moe_norm_w"], params["router_w"], params["router_b"],
      params["expert_w1"], params["expert_w3"], params["expert_w2"],
      params["shared_w1"], params["shared_w3"], params["shared_w2"])


# ------------------------------------------------------------------ block

class Config:
    hidden_size = 64
    num_heads = 2
    qk_nope_head_dim = 16
    qk_rope_head_dim = 16
    v_head_dim = 32
    q_lora_rank = 16
    kv_lora_rank = 32
    moe_intermediate_size = 64
    num_experts = 4
    num_experts_per_token = 2
    shared_intermediate_size = 64 * 4
    attention_scale_factor = 1.0
    rms_eps = 1e-6


def init_params(key, cfg):
    ks = iter(jax.random.split(key, 32))
    H = cfg.hidden_size
    Hh = cfg.num_heads
    qk_dim = cfg.qk_nope_head_dim + cfg.qk_rope_head_dim

    def w(shape):
        # bf16 weights (MXU-native on v5e/v6e/v7x), f32 accumulation inside kernels
        return (jax.random.normal(next(ks), shape, jnp.float32) * 0.05).astype(jnp.bfloat16)

    p = {}
    p["attn_norm_w"] = jnp.ones((1, H), jnp.float32)
    p["moe_norm_w"] = jnp.ones((1, H), jnp.float32)
    # q LoRA path
    p["q_a_w"], p["q_a_b"] = w((H, cfg.q_lora_rank)), jnp.zeros((1, cfg.q_lora_rank), jnp.float32)
    p["q_b_w"], p["q_b_b"] = (w((cfg.q_lora_rank, Hh * qk_dim)),
                              jnp.zeros((1, Hh * qk_dim), jnp.float32))
    # kv LoRA path (compressed kv + shared rope key)
    kv_a_out = cfg.kv_lora_rank + cfg.qk_rope_head_dim
    p["kv_a_w"], p["kv_a_b"] = w((H, kv_a_out)), jnp.zeros((1, kv_a_out), jnp.float32)
    kv_b_out = Hh * (cfg.qk_nope_head_dim + cfg.v_head_dim)
    p["kv_b_w"], p["kv_b_b"] = w((cfg.kv_lora_rank, kv_b_out)), jnp.zeros((1, kv_b_out), jnp.float32)
    # output projection
    p["out_w"], p["out_b"] = w((Hh * cfg.v_head_dim, H)), jnp.zeros((1, H), jnp.float32)
    # MoE router + experts (SwiGLU: w1 gate, w3 up, w2 down)
    p["router_w"], p["router_b"] = (w((H, cfg.num_experts)),
                                    jnp.zeros((1, cfg.num_experts), jnp.float32))
    p["expert_w1"] = w((cfg.num_experts, H, cfg.moe_intermediate_size))
    p["expert_w3"] = w((cfg.num_experts, H, cfg.moe_intermediate_size))
    p["expert_w2"] = w((cfg.num_experts, cfg.moe_intermediate_size, H))
    p["shared_w1"] = w((H, cfg.shared_intermediate_size))
    p["shared_w3"] = w((H, cfg.shared_intermediate_size))
    p["shared_w2"] = w((cfg.shared_intermediate_size, H))
    return p


def transformer_block_forward(params, hidden_states, freqs_cis, cfg):
    # pre-expand cos/sin to full rope width (rotate-half layout) once, outside the kernels
    cos = jnp.real(freqs_cis).astype(jnp.float32)          # (S, rope//2)
    sin = jnp.imag(freqs_cis).astype(jnp.float32)
    cos_full = jnp.concatenate([cos, cos], axis=-1)        # (S, rope)
    sin_full = jnp.concatenate([sin, sin], axis=-1)

    # attention sub-block: one fused pallas_call (rmsnorm + MLA + out_proj + residual)
    h = pallas_attention_block(hidden_states, cos_full, sin_full, params, cfg)
    # MoE sub-block: one fused pallas_call (rmsnorm + router + experts + shared + residual)
    out = pallas_moe_block(h, params, cfg)
    return out, None


# ------------------------------------------------------------------ main

def make_freqs_cis(seq_len, rope_dim, theta=10000.0):
    inv = 1.0 / (theta ** (jnp.arange(0, rope_dim, 2, dtype=jnp.float32) / rope_dim))
    t = jnp.arange(seq_len, dtype=jnp.float32)
    ang = jnp.outer(t, inv)                                # (S, rope//2)
    return jnp.exp(1j * ang).astype(jnp.complex64)


if __name__ == "__main__":
    cfg = Config()
    B, S = 2, 8
    key = jax.random.PRNGKey(0)
    k_param, k_x = jax.random.split(key)
    params = init_params(k_param, cfg)
    x = jax.random.normal(k_x, (B, S, cfg.hidden_size), jnp.float32)
    freqs_cis = make_freqs_cis(S, cfg.qk_rope_head_dim)

    out, attn_w = transformer_block_forward(params, x, freqs_cis, cfg)
    out = jax.block_until_ready(out)
    assert out.shape == (B, S, cfg.hidden_size)
    assert jnp.all(jnp.isfinite(out))
    print("KERNEL_OK")
</pallas_src>

<mosaic_0001>
module attributes {stable_mosaic.version = 11 : i64} {
  func.func @attn_block_kernel(%arg0: i32, %arg1: memref<1x8x64xf32, #tpu.memory_space<vmem>>, %arg2: memref<8x16xf32, #tpu.memory_space<vmem>>, %arg3: memref<8x16xf32, #tpu.memory_space<vmem>>, %arg4: memref<1x64xf32, #tpu.memory_space<vmem>>, %arg5: memref<64x16xbf16, #tpu.memory_space<vmem>>, %arg6: memref<1x16xf32, #tpu.memory_space<vmem>>, %arg7: memref<16x64xbf16, #tpu.memory_space<vmem>>, %arg8: memref<1x64xf32, #tpu.memory_space<vmem>>, %arg9: memref<64x48xbf16, #tpu.memory_space<vmem>>, %arg10: memref<1x48xf32, #tpu.memory_space<vmem>>, %arg11: memref<32x96xbf16, #tpu.memory_space<vmem>>, %arg12: memref<1x96xf32, #tpu.memory_space<vmem>>, %arg13: memref<64x64xbf16, #tpu.memory_space<vmem>>, %arg14: memref<1x64xf32, #tpu.memory_space<vmem>>, %arg15: memref<1x8x64xf32, #tpu.memory_space<vmem>>) attributes {dimension_semantics = [#tpu.dimension_semantics<parallel>], iteration_bounds = array<i64: 2>, scalar_prefetch = 0 : i64, scratch_operands = 0 : i64, tpu.core_type = #tpu.core_type<tc>, window_params = [{transform_indices = @transform_0, window_bounds = array<i64: 1, 8, 64>}, {pipeline_mode = #tpu.pipeline_mode<synchronous>, transform_indices = @transform_1, window_bounds = array<i64: 8, 16>}, {pipeline_mode = #tpu.pipeline_mode<synchronous>, transform_indices = @transform_2, window_bounds = array<i64: 8, 16>}, {pipeline_mode = #tpu.pipeline_mode<synchronous>, transform_indices = @transform_3, window_bounds = array<i64: 1, 64>}, {pipeline_mode = #tpu.pipeline_mode<synchronous>, transform_indices = @transform_4, window_bounds = array<i64: 64, 16>}, {pipeline_mode = #tpu.pipeline_mode<synchronous>, transform_indices = @transform_5, window_bounds = array<i64: 1, 16>}, {pipeline_mode = #tpu.pipeline_mode<synchronous>, transform_indices = @transform_6, window_bounds = array<i64: 16, 64>}, {pipeline_mode = #tpu.pipeline_mode<synchronous>, transform_indices = @transform_7, window_bounds = array<i64: 1, 64>}, {pipeline_mode = #tpu.pipeline_mode<synchronous>, transform_indices = @transform_8, window_bounds = array<i64: 64, 48>}, {pipeline_mode = #tpu.pipeline_mode<synchronous>, transform_indices = @transform_9, window_bounds = array<i64: 1, 48>}, {pipeline_mode = #tpu.pipeline_mode<synchronous>, transform_indices = @transform_10, window_bounds = array<i64: 32, 96>}, {pipeline_mode = #tpu.pipeline_mode<synchronous>, transform_indices = @transform_11, window_bounds = array<i64: 1, 96>}, {pipeline_mode = #tpu.pipeline_mode<synchronous>, transform_indices = @transform_12, window_bounds = array<i64: 64, 64>}, {pipeline_mode = #tpu.pipeline_mode<synchronous>, transform_indices = @transform_13, window_bounds = array<i64: 1, 64>}, {transform_indices = @transform_14, window_bounds = array<i64: 1, 8, 64>}]} {
    %c0 = arith.constant 0 : index
    %c0_0 = arith.constant 0 : index
    %c0_1 = arith.constant 0 : index
    %0 = vector.load %arg1[%c0, %c0_0, %c0_1] : memref<1x8x64xf32, #tpu.memory_space<vmem>>, vector<1x8x64xf32>
    %1 = vector.shape_cast %0 : vector<1x8x64xf32> to vector<8x64xf32>
    %2 = arith.mulf %1, %1 : vector<8x64xf32>
    %cst = arith.constant dense<0.000000e+00> : vector<8xf32>
    %3 = vector.multi_reduction <add>, %2, %cst [1] : vector<8x64xf32> to vector<8xf32>
    %4 = vector.shape_cast %3 : vector<8xf32> to vector<8x1xf32>
    %cst_2 = arith.constant 6.400000e+01 : f32
    %5 = vector.broadcast %cst_2 : f32 to vector<8x1xf32>
    %6 = arith.divf %4, %5 : vector<8x1xf32>
    %cst_3 = arith.constant 9.99999997E-7 : f32
    %7 = vector.broadcast %cst_3 : f32 to vector<8x1xf32>
    %8 = arith.addf %6, %7 : vector<8x1xf32>
    %9 = math.rsqrt %8 : vector<8x1xf32>
    %10 = vector.broadcast %9 : vector<8x1xf32> to vector<8x64xf32>
    %11 = arith.mulf %1, %10 : vector<8x64xf32>
    %c0_4 = arith.constant 0 : index
    %c0_5 = arith.constant 0 : index
    %12 = vector.load %arg4[%c0_4, %c0_5] : memref<1x64xf32, #tpu.memory_space<vmem>>, vector<1x64xf32>
    %13 = vector.broadcast %12 : vector<1x64xf32> to vector<8x64xf32>
    %14 = arith.mulf %11, %13 : vector<8x64xf32>
    %15 = arith.truncf %14 : vector<8x64xf32> to vector<8x64xbf16>
    %c0_6 = arith.constant 0 : index
    %c0_7 = arith.constant 0 : index
    %16 = vector.load %arg5[%c0_6, %c0_7] : memref<64x16xbf16, #tpu.memory_space<vmem>>, vector<64x16xbf16>
    %cst_8 = arith.constant dense<0.000000e+00> : vector<8x16xf32>
    %17 = tpu.matmul %15, %16, %cst_8 {dimension_numbers = #tpu.dot_dimension_numbers<[1], [0], [0], [1], [0, 0, 1, 1], [], []>} : vector<8x64xbf16>, vector<64x16xbf16>, vector<8x16xf32> -> vector<8x16xf32>
    %c0_9 = arith.constant 0 : index
    %c0_10 = arith.constant 0 : index
    %18 = vector.load %arg6[%c0_9, %c0_10] : memref<1x16xf32, #tpu.memory_space<vmem>>, vector<1x16xf32>
    %19 = vector.broadcast %18 : vector<1x16xf32> to vector<8x16xf32>
    %20 = arith.addf %17, %19 : vector<8x16xf32>
    %21 = arith.truncf %20 : vector<8x16xf32> to vector<8x16xbf16>
    %c0_11 = arith.constant 0 : index
    %c0_12 = arith.constant 0 : index
    %22 = vector.load %arg7[%c0_11, %c0_12] : memref<16x64xbf16, #tpu.memory_space<vmem>>, vector<16x64xbf16>
    %cst_13 = arith.constant dense<0.000000e+00> : vector<8x64xf32>
    %23 = tpu.matmul %21, %22, %cst_13 {dimension_numbers = #tpu.dot_dimension_numbers<[1], [0], [0], [1], [0, 0, 1, 1], [], []>} : vector<8x16xbf16>, vector<16x64xbf16>, vector<8x64xf32> -> vector<8x64xf32>
    %c0_14 = arith.constant 0 : index
    %c0_15 = arith.constant 0 : index
    %24 = vector.load %arg8[%c0_14, %c0_15] : memref<1x64xf32, #tpu.memory_space<vmem>>, vector<1x64xf32>
    %25 = vector.broadcast %24 : vector<1x64xf32> to vector<8x64xf32>
    %26 = arith.addf %23, %25 : vector<8x64xf32>
    %c0_16 = arith.constant 0 : index
    %c0_17 = arith.constant 0 : index
    %27 = vector.load %arg9[%c0_16, %c0_17] : memref<64x48xbf16, #tpu.memory_space<vmem>>, vector<64x48xbf16>
    %cst_18 = arith.constant dense<0.000000e+00> : vector<8x48xf32>
    %28 = tpu.matmul %15, %27, %cst_18 {dimension_numbers = #tpu.dot_dimension_numbers<[1], [0], [0], [1], [0, 0, 1, 1], [], []>} : vector<8x64xbf16>, vector<64x48xbf16>, vector<8x48xf32> -> vector<8x48xf32>
    %c0_19 = arith.constant 0 : index
    %c0_20 = arith.constant 0 : index
    %29 = vector.load %arg10[%c0_19, %c0_20] : memref<1x48xf32, #tpu.memory_space<vmem>>, vector<1x48xf32>
    %30 = vector.broadcast %29 : vector<1x48xf32> to vector<8x48xf32>
    %31 = arith.addf %28, %30 : vector<8x48xf32>
    %32 = vector.extract_strided_slice %31 {offsets = [0, 0], sizes = [8, 32], strides = [1, 1]} : vector<8x48xf32> to vector<8x32xf32>
    %33 = vector.extract_strided_slice %31 {offsets = [0, 32], sizes = [8, 16], strides = [1, 1]} : vector<8x48xf32> to vector<8x16xf32>
    %34 = arith.truncf %32 : vector<8x32xf32> to vector<8x32xbf16>
    %c0_21 = arith.constant 0 : index
    %c0_22 = arith.constant 0 : index
    %35 = vector.load %arg11[%c0_21, %c0_22] : memref<32x96xbf16, #tpu.memory_space<vmem>>, vector<32x96xbf16>
    %cst_23 = arith.constant dense<0.000000e+00> : vector<8x96xf32>
    %36 = tpu.matmul %34, %35, %cst_23 {dimension_numbers = #tpu.dot_dimension_numbers<[1], [0], [0], [1], [0, 0, 1, 1], [], []>} : vector<8x32xbf16>, vector<32x96xbf16>, vector<8x96xf32> -> vector<8x96xf32>
    %c0_24 = arith.constant 0 : index
    %c0_25 = arith.constant 0 : index
    %37 = vector.load %arg12[%c0_24, %c0_25] : memref<1x96xf32, #tpu.memory_space<vmem>>, vector<1x96xf32>
    %38 = vector.broadcast %37 : vector<1x96xf32> to vector<8x96xf32>
    %39 = arith.addf %36, %38 : vector<8x96xf32>
    %c0_26 = arith.constant 0 : index
    %c0_27 = arith.constant 0 : index
    %40 = vector.load %arg2[%c0_26, %c0_27] : memref<8x16xf32, #tpu.memory_space<vmem>>, vector<8x16xf32>
    %c0_28 = arith.constant 0 : index
    %c0_29 = arith.constant 0 : index
    %41 = vector.load %arg3[%c0_28, %c0_29] : memref<8x16xf32, #tpu.memory_space<vmem>>, vector<8x16xf32>
    %42 = vector.extract_strided_slice %33 {offsets = [0, 0], sizes = [8, 8], strides = [1, 1]} : vector<8x16xf32> to vector<8x8xf32>
    %43 = vector.extract_strided_slice %33 {offsets = [0, 8], sizes = [8, 8], strides = [1, 1]} : vector<8x16xf32> to vector<8x8xf32>
    %cst_30 = arith.constant 0.000000e+00 : f32
    %44 = vector.broadcast %cst_30 : f32 to vector<8x8xf32>
    %45 = arith.subf %44, %43 : vector<8x8xf32>
    %46 = tpu.concatenate %45, %42 in 1 : vector<8x8xf32>, vector<8x8xf32> -> vector<8x16xf32>
    %47 = arith.mulf %33, %40 : vector<8x16xf32>
    %48 = arith.mulf %46, %41 : vector<8x16xf32>
    %49 = arith.addf %47, %48 : vector<8x16xf32>
    %50 = vector.extract_strided_slice %26 {offsets = [0, 0], sizes = [8, 32], strides = [1, 1]} : vector<8x64xf32> to vector<8x32xf32>
    %51 = vector.extract_strided_slice %50 {offsets = [0, 0], sizes = [8, 16], strides = [1, 1]} : vector<8x32xf32> to vector<8x16xf32>
    %52 = vector.extract_strided_slice %50 {offsets = [0, 16], sizes = [8, 16], strides = [1, 1]} : vector<8x32xf32> to vector<8x16xf32>
    %53 = vector.extract_strided_slice %52 {offsets = [0, 0], sizes = [8, 8], strides = [1, 1]} : vector<8x16xf32> to vector<8x8xf32>
    %54 = vector.extract_strided_slice %52 {offsets = [0, 8], sizes = [8, 8], strides = [1, 1]} : vector<8x16xf32> to vector<8x8xf32>
    %cst_31 = arith.constant 0.000000e+00 : f32
    %55 = vector.broadcast %cst_31 : f32 to vector<8x8xf32>
    %56 = arith.subf %55, %54 : vector<8x8xf32>
    %57 = tpu.concatenate %56, %53 in 1 : vector<8x8xf32>, vector<8x8xf32> -> vector<8x16xf32>
    %58 = arith.mulf %52, %40 : vector<8x16xf32>
    %59 = arith.mulf %57, %41 : vector<8x16xf32>
    %60 = arith.addf %58, %59 : vector<8x16xf32>
    %61 = tpu.concatenate %51, %60 in 1 : vector<8x16xf32>, vector<8x16xf32> -> vector<8x32xf32>
    %62 = vector.extract_strided_slice %39 {offsets = [0, 0], sizes = [8, 48], strides = [1, 1]} : vector<8x96xf32> to vector<8x48xf32>
    %63 = vector.extract_strided_slice %62 {offsets = [0, 0], sizes = [8, 16], strides = [1, 1]} : vector<8x48xf32> to vector<8x16xf32>
    %64 = tpu.concatenate %63, %49 in 1 : vector<8x16xf32>, vector<8x16xf32> -> vector<8x32xf32>
    %65 = vector.extract_strided_slice %62 {offsets = [0, 16], sizes = [8, 32], strides = [1, 1]} : vector<8x48xf32> to vector<8x32xf32>
    %66 = tpu.transpose %64, [1, 0] : vector<8x32xf32> -> vector<32x8xf32>
    %cst_32 = arith.constant dense<0.000000e+00> : vector<8x8xf32>
    %67 = tpu.matmul %61, %66, %cst_32 {dimension_numbers = #tpu.dot_dimension_numbers<[1], [0], [0], [1], [0, 0, 1, 1], [], []>} : vector<8x32xf32>, vector<32x8xf32>, vector<8x8xf32> -> vector<8x8xf32>
    %cst_33 = arith.constant 0.176776692 : f32
    %68 = vector.broadcast %cst_33 : f32 to vector<8x8xf32>
    %69 = arith.mulf %67, %68 : vector<8x8xf32>
    %cst_34 = arith.constant dense<0xFF800000> : vector<8xf32>
    %70 = vector.multi_reduction <maximumf>, %69, %cst_34 [1] : vector<8x8xf32> to vector<8xf32>
    %71 = vector.shape_cast %70 : vector<8xf32> to vector<8x1xf32>
    %72 = vector.broadcast %71 : vector<8x1xf32> to vector<8x8xf32>
    %73 = arith.subf %69, %72 : vector<8x8xf32>
    %74 = math.exp %73 : vector<8x8xf32>
    %cst_35 = arith.constant dense<0.000000e+00> : vector<8xf32>
    %75 = vector.multi_reduction <add>, %74, %cst_35 [1] : vector<8x8xf32> to vector<8xf32>
    %76 = vector.shape_cast %75 : vector<8xf32> to vector<8x1xf32>
    %77 = tpu.reciprocal %76 {approx = true} : vector<8x1xf32> -> vector<8x1xf32>
    %78 = vector.broadcast %77 : vector<8x1xf32> to vector<8x8xf32>
    %79 = arith.mulf %74, %78 : vector<8x8xf32>
    %cst_36 = arith.constant dense<0.000000e+00> : vector<8x32xf32>
    %80 = tpu.matmul %79, %65, %cst_36 {dimension_numbers = #tpu.dot_dimension_numbers<[1], [0], [0], [1], [0, 0, 1, 1], [], []>} : vector<8x8xf32>, vector<8x32xf32>, vector<8x32xf32> -> vector<8x32xf32>
    %81 = vector.extract_strided_slice %26 {offsets = [0, 32], sizes = [8, 32], strides = [1, 1]} : vector<8x64xf32> to vector<8x32xf32>
    %82 = vector.extract_strided_slice %81 {offsets = [0, 0], sizes = [8, 16], strides = [1, 1]} : vector<8x32xf32> to vector<8x16xf32>
    %83 = vector.extract_strided_slice %81 {offsets = [0, 16], sizes = [8, 16], strides = [1, 1]} : vector<8x32xf32> to vector<8x16xf32>
    %84 = vector.extract_strided_slice %83 {offsets = [0, 0], sizes = [8, 8], strides = [1, 1]} : vector<8x16xf32> to vector<8x8xf32>
    %85 = vector.extract_strided_slice %83 {offsets = [0, 8], sizes = [8, 8], strides = [1, 1]} : vector<8x16xf32> to vector<8x8xf32>
    %cst_37 = arith.constant 0.000000e+00 : f32
    %86 = vector.broadcast %cst_37 : f32 to vector<8x8xf32>
    %87 = arith.subf %86, %85 : vector<8x8xf32>
    %88 = tpu.concatenate %87, %84 in 1 : vector<8x8xf32>, vector<8x8xf32> -> vector<8x16xf32>
    %89 = arith.mulf %83, %40 : vector<8x16xf32>
    %90 = arith.mulf %88, %41 : vector<8x16xf32>
    %91 = arith.addf %89, %90 : vector<8x16xf32>
    %92 = tpu.concatenate %82, %91 in 1 : vector<8x16xf32>, vector<8x16xf32> -> vector<8x32xf32>
    %93 = vector.extract_strided_slice %39 {offsets = [0, 48], sizes = [8, 48], strides = [1, 1]} : vector<8x96xf32> to vector<8x48xf32>
    %94 = vector.extract_strided_slice %93 {offsets = [0, 0], sizes = [8, 16], strides = [1, 1]} : vector<8x48xf32> to vector<8x16xf32>
    %95 = tpu.concatenate %94, %49 in 1 : vector<8x16xf32>, vector<8x16xf32> -> vector<8x32xf32>
    %96 = vector.extract_strided_slice %93 {offsets = [0, 16], sizes = [8, 32], strides = [1, 1]} : vector<8x48xf32> to vector<8x32xf32>
    %97 = tpu.transpose %95, [1, 0] : vector<8x32xf32> -> vector<32x8xf32>
    %cst_38 = arith.constant dense<0.000000e+00> : vector<8x8xf32>
    %98 = tpu.matmul %92, %97, %cst_38 {dimension_numbers = #tpu.dot_dimension_numbers<[1], [0], [0], [1], [0, 0, 1, 1], [], []>} : vector<8x32xf32>, vector<32x8xf32>, vector<8x8xf32> -> vector<8x8xf32>
    %cst_39 = arith.constant 0.176776692 : f32
    %99 = vector.broadcast %cst_39 : f32 to vector<8x8xf32>
    %100 = arith.mulf %98, %99 : vector<8x8xf32>
    %cst_40 = arith.constant dense<0xFF800000> : vector<8xf32>
    %101 = vector.multi_reduction <maximumf>, %100, %cst_40 [1] : vector<8x8xf32> to vector<8xf32>
    %102 = vector.shape_cast %101 : vector<8xf32> to vector<8x1xf32>
    %103 = vector.broadcast %102 : vector<8x1xf32> to vector<8x8xf32>
    %104 = arith.subf %100, %103 : vector<8x8xf32>
    %105 = math.exp %104 : vector<8x8xf32>
    %cst_41 = arith.constant dense<0.000000e+00> : vector<8xf32>
    %106 = vector.multi_reduction <add>, %105, %cst_41 [1] : vector<8x8xf32> to vector<8xf32>
    %107 = vector.shape_cast %106 : vector<8xf32> to vector<8x1xf32>
    %108 = tpu.reciprocal %107 {approx = true} : vector<8x1xf32> -> vector<8x1xf32>
    %109 = vector.broadcast %108 : vector<8x1xf32> to vector<8x8xf32>
    %110 = arith.mulf %105, %109 : vector<8x8xf32>
    %cst_42 = arith.constant dense<0.000000e+00> : vector<8x32xf32>
    %111 = tpu.matmul %110, %96, %cst_42 {dimension_numbers = #tpu.dot_dimension_numbers<[1], [0], [0], [1], [0, 0, 1, 1], [], []>} : vector<8x8xf32>, vector<8x32xf32>, vector<8x32xf32> -> vector<8x32xf32>
    %112 = tpu.concatenate %80, %111 in 1 : vector<8x32xf32>, vector<8x32xf32> -> vector<8x64xf32>
    %113 = arith.truncf %112 : vector<8x64xf32> to vector<8x64xbf16>
    %c0_43 = arith.constant 0 : index
    %c0_44 = arith.constant 0 : index
    %114 = vector.load %arg13[%c0_43, %c0_44] : memref<64x64xbf16, #tpu.memory_space<vmem>>, vector<64x64xbf16>
    %cst_45 = arith.constant dense<0.000000e+00> : vector<8x64xf32>
    %115 = tpu.matmul %113, %114, %cst_45 {dimension_numbers = #tpu.dot_dimension_numbers<[1], [0], [0], [1], [0, 0, 1, 1], [], []>} : vector<8x64xbf16>, vector<64x64xbf16>, vector<8x64xf32> -> vector<8x64xf32>
    %c0_46 = arith.constant 0 : index
    %c0_47 = arith.constant 0 : index
    %116 = vector.load %arg14[%c0_46, %c0_47] : memref<1x64xf32, #tpu.memory_space<vmem>>, vector<1x64xf32>
    %117 = vector.broadcast %116 : vector<1x64xf32> to vector<8x64xf32>
    %118 = arith.addf %115, %117 : vector<8x64xf32>
    %119 = arith.addf %1, %118 : vector<8x64xf32>
    %c0_48 = arith.constant 0 : index
    %c0_49 = arith.constant 0 : index
    %c0_50 = arith.constant 0 : index
    %120 = vector.load %arg15[%c0_48, %c0_49, %c0_50] : memref<1x8x64xf32, #tpu.memory_space<vmem>>, vector<1x8x64xf32>
    %121 = vector.shape_cast %120 : vector<1x8x64xf32> to vector<8x64xf32>
    %122 = vector.shape_cast %119 : vector<8x64xf32> to vector<1x8x64xf32>
    tpu.vector_store %arg15[%c0_48, %c0_49, %c0_50], %122 {strides = array<i32>} : memref<1x8x64xf32, #tpu.memory_space<vmem>>, vector<1x8x64xf32>,
    return
  }
  func.func @transform_0(%arg0: i32) -> (i32, i32, i32) {
    %c0_i32 = arith.constant 0 : i32
    %c0_i32_0 = arith.constant 0 : i32
    %c0_i32_1 = arith.constant 0 : i32
    return %arg0, %c0_i32, %c0_i32_0 : i32, i32, i32
  }
  func.func @transform_1(%arg0: i32) -> (i32, i32) {
    %c0_i32 = arith.constant 0 : i32
    %c0_i32_0 = arith.constant 0 : i32
    %c0_i32_1 = arith.constant 0 : i32
    return %c0_i32, %c0_i32_0 : i32, i32
  }
  func.func @transform_2(%arg0: i32) -> (i32, i32) {
    %c0_i32 = arith.constant 0 : i32
    %c0_i32_0 = arith.constant 0 : i32
    %c0_i32_1 = arith.constant 0 : i32
    return %c0_i32, %c0_i32_0 : i32, i32
  }
  func.func @transform_3(%arg0: i32) -> (i32, i32) {
    %c0_i32 = arith.constant 0 : i32
    %c0_i32_0 = arith.constant 0 : i32
    %c0_i32_1 = arith.constant 0 : i32
    return %c0_i32, %c0_i32_0 : i32, i32
  }
  func.func @transform_4(%arg0: i32) -> (i32, i32) {
    %c0_i32 = arith.constant 0 : i32
    %c0_i32_0 = arith.constant 0 : i32
    %c0_i32_1 = arith.constant 0 : i32
    return %c0_i32, %c0_i32_0 : i32, i32
  }
  func.func @transform_5(%arg0: i32) -> (i32, i32) {
    %c0_i32 = arith.constant 0 : i32
    %c0_i32_0 = arith.constant 0 : i32
    %c0_i32_1 = arith.constant 0 : i32
    return %c0_i32, %c0_i32_0 : i32, i32
  }
  func.func @transform_6(%arg0: i32) -> (i32, i32) {
    %c0_i32 = arith.constant 0 : i32
    %c0_i32_0 = arith.constant 0 : i32
    %c0_i32_1 = arith.constant 0 : i32
    return %c0_i32, %c0_i32_0 : i32, i32
  }
  func.func @transform_7(%arg0: i32) -> (i32, i32) {
    %c0_i32 = arith.constant 0 : i32
    %c0_i32_0 = arith.constant 0 : i32
    %c0_i32_1 = arith.constant 0 : i32
    return %c0_i32, %c0_i32_0 : i32, i32
  }
  func.func @transform_8(%arg0: i32) -> (i32, i32) {
    %c0_i32 = arith.constant 0 : i32
    %c0_i32_0 = arith.constant 0 : i32
    %c0_i32_1 = arith.constant 0 : i32
    return %c0_i32, %c0_i32_0 : i32, i32
  }
  func.func @transform_9(%arg0: i32) -> (i32, i32) {
    %c0_i32 = arith.constant 0 : i32
    %c0_i32_0 = arith.constant 0 : i32
    %c0_i32_1 = arith.constant 0 : i32
    return %c0_i32, %c0_i32_0 : i32, i32
  }
  func.func @transform_10(%arg0: i32) -> (i32, i32) {
    %c0_i32 = arith.constant 0 : i32
    %c0_i32_0 = arith.constant 0 : i32
    %c0_i32_1 = arith.constant 0 : i32
    return %c0_i32, %c0_i32_0 : i32, i32
  }
  func.func @transform_11(%arg0: i32) -> (i32, i32) {
    %c0_i32 = arith.constant 0 : i32
    %c0_i32_0 = arith.constant 0 : i32
    %c0_i32_1 = arith.constant 0 : i32
    return %c0_i32, %c0_i32_0 : i32, i32
  }
  func.func @transform_12(%arg0: i32) -> (i32, i32) {
    %c0_i32 = arith.constant 0 : i32
    %c0_i32_0 = arith.constant 0 : i32
    %c0_i32_1 = arith.constant 0 : i32
    return %c0_i32, %c0_i32_0 : i32, i32
  }
  func.func @transform_13(%arg0: i32) -> (i32, i32) {
    %c0_i32 = arith.constant 0 : i32
    %c0_i32_0 = arith.constant 0 : i32
    %c0_i32_1 = arith.constant 0 : i32
    return %c0_i32, %c0_i32_0 : i32, i32
  }
  func.func @transform_14(%arg0: i32) -> (i32, i32, i32) {
    %c0_i32 = arith.constant 0 : i32
    %c0_i32_0 = arith.constant 0 : i32
    %c0_i32_1 = arith.constant 0 : i32
    return %arg0, %c0_i32, %c0_i32_0 : i32, i32, i32
  }
}

</mosaic_0001>

<llo_original>
// kernel: tpu_custom_call.1
$region0: #{tpu_custom_call.1}
  #allocation0 [shape = 'u32[]', space=smem, size = 0x4, offset = 0x4, fixed_abs, tag = 'smem constant byte address 0x4 - core index']
  #allocation1 [shape = 'u32[144,128]{1,0:T(1,128)}', space=vmem, size = 0x12000, scoped, tag = 'internal scratch']
  %s0 = inlined_call_operand.vmem [shape: f32[2,8,64], index: 0, kind: input, shape index: {}]
  %s1 = inlined_call_operand.vmem [shape: f32[8,16], index: 1, kind: input, shape index: {}]
  %s2 = inlined_call_operand.hbm [shape: f32[8,16], index: 2, kind: input, shape index: {}]
  %s3 = inlined_call_operand.vmem [shape: f32[1,64], index: 3, kind: input, shape index: {}]
  %s4 = inlined_call_operand.vmem [shape: bf16[64,16], index: 4, kind: input, shape index: {}]
  %s5 = inlined_call_operand.hbm [shape: f32[1,16], index: 5, kind: input, shape index: {}]
  %s6 = inlined_call_operand.vmem [shape: bf16[16,64], index: 6, kind: input, shape index: {}]
  %s7 = inlined_call_operand.vmem [shape: f32[1,64], index: 7, kind: input, shape index: {}]
  %s8 = inlined_call_operand.vmem [shape: bf16[64,48], index: 8, kind: input, shape index: {}]
  %s9 = inlined_call_operand.vmem [shape: f32[1,48], index: 9, kind: input, shape index: {}]
  %s10 = inlined_call_operand.vmem [shape: bf16[32,96], index: 10, kind: input, shape index: {}]
  %s11 = inlined_call_operand.vmem [shape: f32[1,96], index: 11, kind: input, shape index: {}]
  %s12 = inlined_call_operand.vmem [shape: bf16[64,64], index: 12, kind: input, shape index: {}]
  %s13 = inlined_call_operand.vmem [shape: f32[1,64], index: 13, kind: input, shape index: {}]
  %s14 = inlined_call_operand.hbm [shape: f32[2,8,64], index: 14, kind: output, shape index: {}]
  %s15 = sld [smem:[#allocation0]]
  $region97: #{tpu_custom_call.1} parent=0
    _
  %s17 = ssub.s32 1, %s15
  %s18 = scalar_select 0, %s17, %s15
  $region1: #{tpu_custom_call.1} parent=0
    #allocation2 [shape = 'u8[4096]{0}', space=vmem, size = 0x1000, scoped, tag = 'input window, operand 2, single buffered']
    #allocation3 [shape = 's32[2]{0}', space=sflag, size = 0x8, scoped, tag = 'scoped memory for tpu_custom_call.1']
    #allocation4 [shape = 's32[2]{0}', space=sflag, size = 0x8, scoped, tag = 'scoped memory for tpu_custom_call.1']
    #allocation5 [shape = 'u8[512]{0}', space=vmem, size = 0x400, scoped, tag = 'input window, operand 5, single buffered']
    #allocation6 [shape = 's32[1]{0}', space=sflag, size = 0x4, scoped, tag = 'scoped memory for tpu_custom_call.1']
    #allocation7 [shape = 'u8[8192]{0}', space=vmem, size = 0x2000, scoped, tag = 'output window, operand 0']
    %19 = vsyncpa [#allocation3], 0
    %20 = vsyncpa [#allocation6], 0
    %21 = vsyncpa [#allocation4], 0
    %s22 = scalar_lea.sflag [#allocation4], 1
    %23 = vsyncpa %s22, 0
    loop: start=0, step=1, limit=4
    $region2: #{tpu_custom_call.1} parent=1 // loop_pre_header
      _
    $region3: #{tpu_custom_call.1} parent=1 // loop_header
      %s25 = sphi 0, %s29
      %p26 = scmp.ge.s32.totalorder %s25, 4
      %s35 = sphi 0, %s37
      %s38 = sphi 0, %s35
      %s39 = sphi 0, %s38
      %s55 = sphi 0, %s39
      %s59 = sphi 0, %s59
      %s61 = sphi 0, %s59
      %s62 = sphi 0, %s61
      %s76 = sphi 0, %s62
      %s80 = sphi 0, %s80
      %s82 = sphi 0, %s80
      %s83 = sphi 0, %s82
      %s97 = sphi 0, %s83
      %s101 = sphi 0, %s101
      %s103 = sphi 0, %s101
      %s104 = sphi 0, %s103
      %s118 = sphi 0, %s104
      %s122 = sphi 0, %s122
      %s124 = sphi 0, %s122
      %s125 = sphi 0, %s124
      %s139 = sphi 0, %s125
      %s143 = sphi 0, %s143
      %s145 = sphi 0, %s143
      %s146 = sphi 0, %s145
      %s160 = sphi 0, %s146
      %s164 = sphi 0, %s164
      %s166 = sphi 0, %s164
      %s167 = sphi 0, %s166
      %s181 = sphi 0, %s167
      %s185 = sphi 0, %s185
      %s187 = sphi 0, %s185
      %s188 = sphi 0, %s187
      %s202 = sphi 0, %s188
      %s206 = sphi 0, %s206
      %s208 = sphi 0, %s206
      %s209 = sphi 0, %s208
      %s223 = sphi 0, %s209
      %s227 = sphi 0, %s227
      %s229 = sphi 0, %s227
      %s230 = sphi 0, %s229
      %s244 = sphi 0, %s230
      %s248 = sphi 0, %s248
      %s250 = sphi 0, %s248
      %s251 = sphi 0, %s250
      %s265 = sphi 0, %s251
      %s269 = sphi 0, %s269
      %s271 = sphi 0, %s269
      %s272 = sphi 0, %s271
      %s286 = sphi 0, %s272
      %s290 = sphi 0, %s290
      %s292 = sphi 0, %s290
      %s293 = sphi 0, %s292
      %s307 = sphi 0, %s293
      %s311 = sphi 0, %s311
      %s313 = sphi 0, %s311
      %s314 = sphi 0, %s313
      %s328 = sphi 0, %s314
      %s334 = sphi 0, %s336
      %s337 = sphi 0, %s334
      %s338 = sphi 0, %s337
      %s354 = sphi 0, %s338
    $region4: #{tpu_custom_call.1} parent=1 // loop_header_branch
      %28 = sbr.rel (%p26) target = $region8
    $region5: #{tpu_custom_call.1} parent=1 // loop_body
      %s30 = ssub.s32 %s25, 1
      %s31 = ssub.s32 %s25, 2
      %s32 = sadd.s32 %s25, 1
      %s33 = ssub.s32 %s25, %s32
      %p34 = scmp.eq.s32.totalorder %s33, 0
      %s36 = sadd.s32 %s35, 1
      %s37 = scalar_select %p34, %s35, %s36
      %p40 = pneg %p34
      %p41 = scmp.eq.s32.totalorder %s25, 1
      %p42 = por %p40, %p41
      %p43 = scmp.ne.s32.totalorder %s35, %s38
      %p44 = scmp.eq.s32.totalorder %s25, 0
      %p45 = por %p43, %p44
      %p46 = scmp.ne.s32.totalorder %s35, %s38
      %p47 = scmp.eq.s32.totalorder %s30, 1
      %p48 = por %p46, %p47
      %p49 = scmp.ne.s32.totalorder %s38, %s39
      %p50 = scmp.eq.s32.totalorder %s30, 0
      %p51 = por %p49, %p50
      %p52 = scmp.ne.s32.totalorder %s38, %s39
      %p53 = scmp.eq.s32.totalorder %s31, 1
      %p54 = por %p52, %p53
      %p56 = scmp.ne.s32.totalorder %s39, %s55
      %p57 = scmp.eq.s32.totalorder %s31, 0
      %p58 = por %p56, %p57
      %s60 = sadd.s32 %s59, 1
      %p63 = scmp.eq.s32.totalorder %s25, 1
      %p64 = scmp.ne.s32.totalorder %s59, %s61
      %p65 = scmp.eq.s32.totalorder %s25, 0
      %p66 = por %p64, %p65
      %p67 = scmp.ne.s32.totalorder %s59, %s61
      %p68 = scmp.eq.s32.totalorder %s30, 1
      %p69 = por %p67, %p68
      %p70 = scmp.ne.s32.totalorder %s61, %s62
      %p71 = scmp.eq.s32.totalorder %s30, 0
      %p72 = por %p70, %p71
      %p73 = scmp.ne.s32.totalorder %s61, %s62
      %p74 = scmp.eq.s32.totalorder %s31, 1
      %p75 = por %p73, %p74
      %p77 = scmp.ne.s32.totalorder %s62, %s76
      %p78 = scmp.eq.s32.totalorder %s31, 0
      %p79 = por %p77, %p78
      %s81 = sadd.s32 %s80, 1
      %p84 = scmp.eq.s32.totalorder %s25, 1
      %p85 = scmp.ne.s32.totalorder %s80, %s82
      %p86 = scmp.eq.s32.totalorder %s25, 0
      %p87 = por %p85, %p86
      %p88 = scmp.ne.s32.totalorder %s80, %s82
      %p89 = scmp.eq.s32.totalorder %s30, 1
      %p90 = por %p88, %p89
      %p91 = scmp.ne.s32.totalorder %s82, %s83
      %p92 = scmp.eq.s32.totalorder %s30, 0
      %p93 = por %p91, %p92
      %p94 = scmp.ne.s32.totalorder %s82, %s83
      %p95 = scmp.eq.s32.totalorder %s31, 1
      %p96 = por %p94, %p95
      %p98 = scmp.ne.s32.totalorder %s83, %s97
      %p99 = scmp.eq.s32.totalorder %s31, 0
      %p100 = por %p98, %p99
      %s102 = sadd.s32 %s101, 1
      %p105 = scmp.eq.s32.totalorder %s25, 1
      %p106 = scmp.ne.s32.totalorder %s101, %s103
      %p107 = scmp.eq.s32.totalorder %s25, 0
      %p108 = por %p106, %p107
      %p109 = scmp.ne.s32.totalorder %s101, %s103
      %p110 = scmp.eq.s32.totalorder %s30, 1
      %p111 = por %p109, %p110
      %p112 = scmp.ne.s32.totalorder %s103, %s104
      %p113 = scmp.eq.s32.totalorder %s30, 0
      %p114 = por %p112, %p113
      %p115 = scmp.ne.s32.totalorder %s103, %s104
      %p116 = scmp.eq.s32.totalorder %s31, 1
      %p117 = por %p115, %p116
      %p119 = scmp.ne.s32.totalorder %s104, %s118
      %p120 = scmp.eq.s32.totalorder %s31, 0
      %p121 = por %p119, %p120
      %s123 = sadd.s32 %s122, 1
      %p126 = scmp.eq.s32.totalorder %s25, 1
      %p127 = scmp.ne.s32.totalorder %s122, %s124
      %p128 = scmp.eq.s32.totalorder %s25, 0
      %p129 = por %p127, %p128
      %p130 = scmp.ne.s32.totalorder %s122, %s124
      %p131 = scmp.eq.s32.totalorder %s30, 1
      %p132 = por %p130, %p131
      %p133 = scmp.ne.s32.totalorder %s124, %s125
      %p134 = scmp.eq.s32.totalorder %s30, 0
      %p135 = por %p133, %p134
      %p136 = scmp.ne.s32.totalorder %s124, %s125
      %p137 = scmp.eq.s32.totalorder %s31, 1
      %p138 = por %p136, %p137
      %p140 = scmp.ne.s32.totalorder %s125, %s139
      %p141 = scmp.eq.s32.totalorder %s31, 0
      %p142 = por %p140, %p141
      %s144 = sadd.s32 %s143, 1
      %p147 = scmp.eq.s32.totalorder %s25, 1
      %p148 = scmp.ne.s32.totalorder %s143, %s145
      %p149 = scmp.eq.s32.totalorder %s25, 0
      %p150 = por %p148, %p149
      %p151 = scmp.ne.s32.totalorder %s143, %s145
      %p152 = scmp.eq.s32.totalorder %s30, 1
      %p153 = por %p151, %p152
      %p154 = scmp.ne.s32.totalorder %s145, %s146
      %p155 = scmp.eq.s32.totalorder %s30, 0
      %p156 = por %p154, %p155
      %p157 = scmp.ne.s32.totalorder %s145, %s146
      %p158 = scmp.eq.s32.totalorder %s31, 1
      %p159 = por %p157, %p158
      %p161 = scmp.ne.s32.totalorder %s146, %s160
      %p162 = scmp.eq.s32.totalorder %s31, 0
      %p163 = por %p161, %p162
      %s165 = sadd.s32 %s164, 1
      %p168 = scmp.eq.s32.totalorder %s25, 1
      %p169 = scmp.ne.s32.totalorder %s164, %s166
      %p170 = scmp.eq.s32.totalorder %s25, 0
      %p171 = por %p169, %p170
      %p172 = scmp.ne.s32.totalorder %s164, %s166
      %p173 = scmp.eq.s32.totalorder %s30, 1
      %p174 = por %p172, %p173
      %p175 = scmp.ne.s32.totalorder %s166, %s167
      %p176 = scmp.eq.s32.totalorder %s30, 0
      %p177 = por %p175, %p176
      %p178 = scmp.ne.s32.totalorder %s166, %s167
      %p179 = scmp.eq.s32.totalorder %s31, 1
      %p180 = por %p178, %p179
      %p182 = scmp.ne.s32.totalorder %s167, %s181
      %p183 = scmp.eq.s32.totalorder %s31, 0
      %p184 = por %p182, %p183
      %s186 = sadd.s32 %s185, 1
      %p189 = scmp.eq.s32.totalorder %s25, 1
      %p190 = scmp.ne.s32.totalorder %s185, %s187
      %p191 = scmp.eq.s32.totalorder %s25, 0
      %p192 = por %p190, %p191
      %p193 = scmp.ne.s32.totalorder %s185, %s187
      %p194 = scmp.eq.s32.totalorder %s30, 1
      %p195 = por %p193, %p194
      %p196 = scmp.ne.s32.totalorder %s187, %s188
      %p197 = scmp.eq.s32.totalorder %s30, 0
      %p198 = por %p196, %p197
      %p199 = scmp.ne.s32.totalorder %s187, %s188
      %p200 = scmp.eq.s32.totalorder %s31, 1
      %p201 = por %p199, %p200
      %p203 = scmp.ne.s32.totalorder %s188, %s202
      %p204 = scmp.eq.s32.totalorder %s31, 0
      %p205 = por %p203, %p204
      %s207 = sadd.s32 %s206, 1
      %p210 = scmp.eq.s32.totalorder %s25, 1
      %p211 = scmp.ne.s32.totalorder %s206, %s208
      %p212 = scmp.eq.s32.totalorder %s25, 0
      %p213 = por %p211, %p212
      %p214 = scmp.ne.s32.totalorder %s206, %s208
      %p215 = scmp.eq.s32.totalorder %s30, 1
      %p216 = por %p214, %p215
      %p217 = scmp.ne.s32.totalorder %s208, %s209
      %p218 = scmp.eq.s32.totalorder %s30, 0
      %p219 = por %p217, %p218
      %p220 = scmp.ne.s32.totalorder %s208, %s209
      %p221 = scmp.eq.s32.totalorder %s31, 1
      %p222 = por %p220, %p221
      %p224 = scmp.ne.s32.totalorder %s209, %s223
      %p225 = scmp.eq.s32.totalorder %s31, 0
      %p226 = por %p224, %p225
      %s228 = sadd.s32 %s227, 1
      %p231 = scmp.eq.s32.totalorder %s25, 1
      %p232 = scmp.ne.s32.totalorder %s227, %s229
      %p233 = scmp.eq.s32.totalorder %s25, 0
      %p234 = por %p232, %p233
      %p235 = scmp.ne.s32.totalorder %s227, %s229
      %p236 = scmp.eq.s32.totalorder %s30, 1
      %p237 = por %p235, %p236
      %p238 = scmp.ne.s32.totalorder %s229, %s230
      %p239 = scmp.eq.s32.totalorder %s30, 0
      %p240 = por %p238, %p239
      %p241 = scmp.ne.s32.totalorder %s229, %s230
      %p242 = scmp.eq.s32.totalorder %s31, 1
      %p243 = por %p241, %p242
      %p245 = scmp.ne.s32.totalorder %s230, %s244
      %p246 = scmp.eq.s32.totalorder %s31, 0
      %p247 = por %p245, %p246
      %s249 = sadd.s32 %s248, 1
      %p252 = scmp.eq.s32.totalorder %s25, 1
      %p253 = scmp.ne.s32.totalorder %s248, %s250
      %p254 = scmp.eq.s32.totalorder %s25, 0
      %p255 = por %p253, %p254
      %p256 = scmp.ne.s32.totalorder %s248, %s250
      %p257 = scmp.eq.s32.totalorder %s30, 1
      %p258 = por %p256, %p257
      %p259 = scmp.ne.s32.totalorder %s250, %s251
      %p260 = scmp.eq.s32.totalorder %s30, 0
      %p261 = por %p259, %p260
      %p262 = scmp.ne.s32.totalorder %s250, %s251
      %p263 = scmp.eq.s32.totalorder %s31, 1
      %p264 = por %p262, %p263
      %p266 = scmp.ne.s32.totalorder %s251, %s265
      %p267 = scmp.eq.s32.totalorder %s31, 0
      %p268 = por %p266, %p267
      %s270 = sadd.s32 %s269, 1
      %p273 = scmp.eq.s32.totalorder %s25, 1
      %p274 = scmp.ne.s32.totalorder %s269, %s271
      %p275 = scmp.eq.s32.totalorder %s25, 0
      %p276 = por %p274, %p275
      %p277 = scmp.ne.s32.totalorder %s269, %s271
      %p278 = scmp.eq.s32.totalorder %s30, 1
      %p279 = por %p277, %p278
      %p280 = scmp.ne.s32.totalorder %s271, %s272
      %p281 = scmp.eq.s32.totalorder %s30, 0
      %p282 = por %p280, %p281
      %p283 = scmp.ne.s32.totalorder %s271, %s272
      %p284 = scmp.eq.s32.totalorder %s31, 1
      %p285 = por %p283, %p284
      %p287 = scmp.ne.s32.totalorder %s272, %s286
      %p288 = scmp.eq.s32.totalorder %s31, 0
      %p289 = por %p287, %p288
      %s291 = sadd.s32 %s290, 1
      %p294 = scmp.eq.s32.totalorder %s25, 1
      %p295 = scmp.ne.s32.totalorder %s290, %s292
      %p296 = scmp.eq.s32.totalorder %s25, 0
      %p297 = por %p295, %p296
      %p298 = scmp.ne.s32.totalorder %s290, %s292
      %p299 = scmp.eq.s32.totalorder %s30, 1
      %p300 = por %p298, %p299
      %p301 = scmp.ne.s32.totalorder %s292, %s293
      %p302 = scmp.eq.s32.totalorder %s30, 0
      %p303 = por %p301, %p302
      %p304 = scmp.ne.s32.totalorder %s292, %s293
      %p305 = scmp.eq.s32.totalorder %s31, 1
      %p306 = por %p304, %p305
      %p308 = scmp.ne.s32.totalorder %s293, %s307
      %p309 = scmp.eq.s32.totalorder %s31, 0
      %p310 = por %p308, %p309
      %s312 = sadd.s32 %s311, 1
      %p315 = scmp.eq.s32.totalorder %s25, 1
      %p316 = scmp.ne.s32.totalorder %s311, %s313
      %p317 = scmp.eq.s32.totalorder %s25, 0
      %p318 = por %p316, %p317
      %p319 = scmp.ne.s32.totalorder %s311, %s313
      %p320 = scmp.eq.s32.totalorder %s30, 1
      %p321 = por %p319, %p320
      %p322 = scmp.ne.s32.totalorder %s313, %s314
      %p323 = scmp.eq.s32.totalorder %s30, 0
      %p324 = por %p322, %p323
      %p325 = scmp.ne.s32.totalorder %s313, %s314
      %p326 = scmp.eq.s32.totalorder %s31, 1
      %p327 = por %p325, %p326
      %p329 = scmp.ne.s32.totalorder %s314, %s328
      %p330 = scmp.eq.s32.totalorder %s31, 0
      %p331 = por %p329, %p330
      %s332 = ssub.s32 %s25, %s32
      %p333 = scmp.eq.s32.totalorder %s332, 0
      %s335 = sadd.s32 %s334, 1
      %s336 = scalar_select %p333, %s334, %s335
      %p339 = pneg %p333
      %p340 = scmp.eq.s32.totalorder %s25, 1
      %p341 = por %p339, %p340
      %p342 = scmp.ne.s32.totalorder %s334, %s337
      %p343 = scmp.eq.s32.totalorder %s25, 0
      %p344 = por %p342, %p343
      %p345 = scmp.ne.s32.totalorder %s334, %s337
      %p346 = scmp.eq.s32.totalorder %s30, 1
      %p347 = por %p345, %p346
      %p348 = scmp.ne.s32.totalorder %s337, %s338
      %p349 = scmp.eq.s32.totalorder %s30, 0
      %p350 = por %p348, %p349
      %p351 = scmp.ne.s32.totalorder %s337, %s338
      %p352 = scmp.eq.s32.totalorder %s31, 1
      %p353 = por %p351, %p352
      %p355 = scmp.ne.s32.totalorder %s338, %s354
      %p356 = scmp.eq.s32.totalorder %s31, 0
      %p357 = por %p355, %p356
      %p358 = scmp.le.s32.totalorder 1, %s25
      %p359 = scmp.lt.s32.totalorder %s25, 3
      %p360 = pnand %p358, %p359
      %p361 = pneg %p360
      // Predicated region
      $region9: #{tpu_custom_call.1} parent=5 // pred_check
        _
      $region10: #{tpu_custom_call.1} parent=5 // pred_check_branch
        %363 = sbr.rel (%p360) target = $region12
      $region11: #{tpu_custom_call.1} parent=5 // pred_region
        %s364 = ssub.s32 %s25, 1
        // Predicated region
        $region13: #{tpu_custom_call.1} parent=11 // pred_check
          %p365 = pneg %p72
        $region14: #{tpu_custom_call.1} parent=11 // pred_check_branch
          %367 = sbr.rel (%p365) target = $region16
        $region15: #{tpu_custom_call.1} parent=11 // pred_region
          _
        $region16: #{tpu_custom_call.1} parent=11 // pred_fallthru
          _
        // Predicated region
        $region17: #{tpu_custom_call.1} parent=11 // pred_check
          %p368 = pneg %p93
        $region18: #{tpu_custom_call.1} parent=11 // pred_check_branch
          %370 = sbr.rel (%p368) target = $region20
        $region19: #{tpu_custom_call.1} parent=11 // pred_region
          %s372 = ssub.s32 128, 128
          %373 = vsyncadd [#allocation3], %s372
          %s375 = sshll.u32 [#allocation2], 4
          %s376 = int_to_ptr.vmem [resolvable:$true] %s375
          %378 = dma.hbm_to_vmem [thread:$0]  %s2, 128, %s376, [#allocation3]
        $region20: #{tpu_custom_call.1} parent=11 // pred_fallthru
          _
        // Predicated region
        $region21: #{tpu_custom_call.1} parent=11 // pred_check
          %p379 = pneg %p114
        $region22: #{tpu_custom_call.1} parent=11 // pred_check_branch
          %381 = sbr.rel (%p379) target = $region24
        $region23: #{tpu_custom_call.1} parent=11 // pred_region
          _
        $region24: #{tpu_custom_call.1} parent=11 // pred_fallthru
          _
        // Predicated region
        $region25: #{tpu_custom_call.1} parent=11 // pred_check
          %p382 = pneg %p135
        $region26: #{tpu_custom_call.1} parent=11 // pred_check_branch
          %384 = sbr.rel (%p382) target = $region28
        $region27: #{tpu_custom_call.1} parent=11 // pred_region
          _
        $region28: #{tpu_custom_call.1} parent=11 // pred_fallthru
          _
        // Predicated region
        $region29: #{tpu_custom_call.1} parent=11 // pred_check
          %p385 = pneg %p156
        $region30: #{tpu_custom_call.1} parent=11 // pred_check_branch
          %387 = sbr.rel (%p385) target = $region32
        $region31: #{tpu_custom_call.1} parent=11 // pred_region
          %s389 = ssub.s32 16, 16
          %390 = vsyncadd [#allocation6], %s389
          %s392 = sshll.u32 [#allocation5], 4
          %s393 = int_to_ptr.vmem [resolvable:$true] %s392
          %395 = dma.hbm_to_vmem [thread:$0]  %s5, 16, %s393, [#allocation6]
        $region32: #{tpu_custom_call.1} parent=11 // pred_fallthru
          _
        // Predicated region
        $region33: #{tpu_custom_call.1} parent=11 // pred_check
          %p396 = pneg %p177
        $region34: #{tpu_custom_call.1} parent=11 // pred_check_branch
          %398 = sbr.rel (%p396) target = $region36
        $region35: #{tpu_custom_call.1} parent=11 // pred_region
          _
        $region36: #{tpu_custom_call.1} parent=11 // pred_fallthru
          _
        // Predicated region
        $region37: #{tpu_custom_call.1} parent=11 // pred_check
          %p399 = pneg %p198
        $region38: #{tpu_custom_call.1} parent=11 // pred_check_branch
          %401 = sbr.rel (%p399) target = $region40
        $region39: #{tpu_custom_call.1} parent=11 // pred_region
          _
        $region40: #{tpu_custom_call.1} parent=11 // pred_fallthru
          _
        // Predicated region
        $region41: #{tpu_custom_call.1} parent=11 // pred_check
          %p402 = pneg %p219
        $region42: #{tpu_custom_call.1} parent=11 // pred_check_branch
          %404 = sbr.rel (%p402) target = $region44
        $region43: #{tpu_custom_call.1} parent=11 // pred_region
          _
        $region44: #{tpu_custom_call.1} parent=11 // pred_fallthru
          _
        // Predicated region
        $region45: #{tpu_custom_call.1} parent=11 // pred_check
          %p405 = pneg %p240
        $region46: #{tpu_custom_call.1} parent=11 // pred_check_branch
          %407 = sbr.rel (%p405) target = $region48
        $region47: #{tpu_custom_call.1} parent=11 // pred_region
          _
        $region48: #{tpu_custom_call.1} parent=11 // pred_fallthru
          _
        // Predicated region
        $region49: #{tpu_custom_call.1} parent=11 // pred_check
          %p408 = pneg %p261
        $region50: #{tpu_custom_call.1} parent=11 // pred_check_branch
          %410 = sbr.rel (%p408) target = $region52
        $region51: #{tpu_custom_call.1} parent=11 // pred_region
          _
        $region52: #{tpu_custom_call.1} parent=11 // pred_fallthru
          _
        // Predicated region
        $region53: #{tpu_custom_call.1} parent=11 // pred_check
          %p411 = pneg %p282
        $region54: #{tpu_custom_call.1} parent=11 // pred_check_branch
          %413 = sbr.rel (%p411) target = $region56
        $region55: #{tpu_custom_call.1} parent=11 // pred_region
          _
        $region56: #{tpu_custom_call.1} parent=11 // pred_fallthru
          _
        // Predicated region
        $region57: #{tpu_custom_call.1} parent=11 // pred_check
          %p414 = pneg %p303
        $region58: #{tpu_custom_call.1} parent=11 // pred_check_branch
          %416 = sbr.rel (%p414) target = $region60
        $region59: #{tpu_custom_call.1} parent=11 // pred_region
          _
        $region60: #{tpu_custom_call.1} parent=11 // pred_fallthru
          _
        // Predicated region
        $region61: #{tpu_custom_call.1} parent=11 // pred_check
          %p417 = pneg %p324
        $region62: #{tpu_custom_call.1} parent=11 // pred_check_branch
          %419 = sbr.rel (%p417) target = $region64
        $region63: #{tpu_custom_call.1} parent=11 // pred_region
          _
        $region64: #{tpu_custom_call.1} parent=11 // pred_fallthru
          _
      $region12: #{tpu_custom_call.1} parent=5 // pred_fallthru
        _
      %p420 = scmp.lt.s32.totalorder %s25, 2
      // Predicated region
      $region65: #{tpu_custom_call.1} parent=5 // pred_check
        %p421 = pneg %p420
      $region66: #{tpu_custom_call.1} parent=5 // pred_check_branch
        %423 = sbr.rel (%p421) target = $region68
      $region67: #{tpu_custom_call.1} parent=5 // pred_region
        // Predicated region
        $region69: #{tpu_custom_call.1} parent=67 // pred_check
          %p424 = pneg %p45
        $region70: #{tpu_custom_call.1} parent=67 // pred_check_branch
          %426 = sbr.rel (%p424) target = $region72
        $region71: #{tpu_custom_call.1} parent=67 // pred_region
          %p427 = scmp.lt.s32.totalorder %s25, 1
          %s428 = scalar_select %p427, %s25, 1
          %s429 = smul.addr %s428, 8
          %s430 = scalar_lea.vmem %s0, %s429
        $region72: #{tpu_custom_call.1} parent=67 // pred_fallthru
          _
      $region68: #{tpu_custom_call.1} parent=5 // pred_fallthru
        _
      %p431 = scmp.le.s32.totalorder 1, %s25
      %p432 = scmp.lt.s32.totalorder %s25, 3
      %p433 = pnand %p431, %p432
      %p434 = pneg %p433
      // Predicated region
      $region73: #{tpu_custom_call.1} parent=5 // pred_check
        _
      $region74: #{tpu_custom_call.1} parent=5 // pred_check_branch
        %436 = sbr.rel (%p433) target = $region76
      $region75: #{tpu_custom_call.1} parent=5 // pred_region
        %s437 = ssub.s32 %s25, 1
        // Predicated region
        $region77: #{tpu_custom_call.1} parent=75 // pred_check
          %p438 = pneg %p93
        $region78: #{tpu_custom_call.1} parent=75 // pred_check_branch
          %440 = sbr.rel (%p438) target = $region80
        $region79: #{tpu_custom_call.1} parent=75 // pred_region
          %441 = dma.done [#allocation3], 128
        $region80: #{tpu_custom_call.1} parent=75 // pred_fallthru
          _
        // Predicated region
        $region81: #{tpu_custom_call.1} parent=75 // pred_check
          %p442 = pneg %p156
        $region82: #{tpu_custom_call.1} parent=75 // pred_check_branch
          %444 = sbr.rel (%p442) target = $region84
        $region83: #{tpu_custom_call.1} parent=75 // pred_region
          %445 = dma.done [#allocation6], 16
        $region84: #{tpu_custom_call.1} parent=75 // pred_fallthru
          _
        %p446 = scmp.lt.s32.totalorder %s30, 1
        %s447 = scalar_select %p446, %s30, 1
        %s448 = smul.addr %s447, 8
        %s449 = scalar_lea.vmem %s0, %s448
        %p450 = pneg %p51
        %p451 = pneg %p48
        %p452 = pneg %p72
        %p453 = pneg %p69
        %p454 = pneg %p93
        %p455 = pneg %p90
        %p456 = pneg %p114
        %p457 = pneg %p111
        %p458 = pneg %p135
        %p459 = pneg %p132
        %p460 = pneg %p156
        %p461 = pneg %p153
        %p462 = pneg %p177
        %p463 = pneg %p174
        %p464 = pneg %p198
        %p465 = pneg %p195
        %p466 = pneg %p219
        %p467 = pneg %p216
        %p468 = pneg %p240
        %p469 = pneg %p237
        %p470 = pneg %p261
        %p471 = pneg %p258
        %p472 = pneg %p282
        %p473 = pneg %p279
        %p474 = pneg %p303
        %p475 = pneg %p300
        %p476 = pneg %p324
        %p477 = pneg %p321
        %p478 = pneg %p350
        %p479 = pneg %p347
        %s480 = sand.u32 %s337, 1
        %s481 = scalar_lea.sflag [#allocation4], %s480
        %s482 = sand.u32 %s337, 1
        %s483 = smul.addr %s482, 8
        %s484 = scalar_lea.vmem [#allocation7], %s483
        %p485 = scmp.lt.s32.totalorder %s30, 1
        %s486 = scalar_select %p485, %s30, 1
        %s487 = smul.addr %s486, 8
        %s488 = scalar_lea.vmem %s0, %s487
        %v490 = vld [vmem:[%s488] sm:$0xff]
        %v491 = vmul.f32 %v490, %v490
        %vm492 = vcmask 523264
        %v493 = vsel %vm492, %v491, 0.0
        %494 = vadd.xlane.f32.xlu0 %v493
        %v495 = vpop.xlane.xlu0 %494
        %v496 = vrcp.pop 64.0
        %v497 = vmul.f32 %v495, %v496
        %v498 = vadd.f32 %v497, 1e-06
        %v499 = vrsqrt.pop %v498
        %v500 = vmul.f32 %v490, %v499
        %v501 = vld [vmem:[%s3] sm:$0x1]
        %v503 = vlaneseq
        %v504 = vshrl.u32 %v503, 7
        %v505 = vsub.s32 0, %v504
        %v506 = vrot.slane %v501, %v505
        %v508 = vmul.f32 %v500, %v506
        %v509 = vpack.c.bf16 %v508, %v508
        %v510 = vld [vmem:[%s4] sm:$0xf]
        %v511 = vld [vmem:[%s4 + $0x4] sm:$0xf]
        %v512 = vld [vmem:[%s4 + $0x8] sm:$0xf]
        %v513 = vld [vmem:[%s4 + $0xc] sm:$0xf]
        %v514 = vld [vmem:[%s4 + $0x10] sm:$0xf]
        %v515 = vld [vmem:[%s4 + $0x14] sm:$0xf]
        %v516 = vld [vmem:[%s4 + $0x18] sm:$0xf]
        %v517 = vld [vmem:[%s4 + $0x1c] sm:$0xf]
        %v518 = vld [vmem:[#allocation5] sm:$0x1]
        %v520 = vlaneseq
        %v521 = vshrl.u32 %v520, 7
        %v522 = vsub.s32 0, %v521
        %v523 = vrot.slane %v518, %v522
        %v533 = vunpack.c.l.b16 %v510
        %v534 = vunpack.c.l.b16 %v511
        %v535 = vunpack.c.l.b16 %v512
        %v536 = vunpack.c.l.b16 %v513
        %v537 = vunpack.c.l.b16 %v514
        %v538 = vunpack.c.l.b16 %v515
        %v539 = vunpack.c.l.b16 %v516
        %v540 = vunpack.c.l.b16 %v517
        %v541 = vpack.c.b16 %v534, %v533
        %v542 = vpack.c.b16 %v536, %v535
        %v543 = vpack.c.b16 %v538, %v537
        %v544 = vpack.c.b16 %v540, %v539
        %v550 = vsel %vm492, %v509, 0
        %552 = vmatprep.subr.bf16.mxu0 0
        %553 = vmatpush1.bf16.msra.mxu0 0
        %554 = vmatprep.subr.bf16.mxu0 0
        %555 = vmatpush1.bf16.msra.mxu0 0
        %556 = vmatprep.subr.bf16.mxu0 0
        %557 = vmatpush1.bf16.msra.mxu0 0
        %558 = vmatprep.subr.bf16.mxu0 0
        %559 = vmatpush1.bf16.msra.mxu0 0
        %560 = vmatprep.subr.bf16.mxu0 0
        %561 = vmatpush1.bf16.msra.mxu0 %v544
        %562 = vmatprep.subr.bf16.mxu0 0
        %563 = vmatpush1.bf16.msra.mxu0 %v543
        %564 = vmatprep.subr.bf16.mxu0 0
        %565 = vmatpush1.bf16.msra.mxu0 %v542
        %566 = vmatprep.subr.bf16.mxu0 0
        %567 = vmatpush1.bf16.msra.mxu0 %v541
        %568 = vmatprep.subr.bf16.mxu0 0
        %569 = vmatpush2.bf16.msra.mxu0 0
        %570 = vmatprep.subr.bf16.mxu0 0
        %571 = vmatpush2.bf16.msra.mxu0 0
        %572 = vmatprep.subr.bf16.mxu0 0
        %573 = vmatpush2.bf16.msra.mxu0 0
        %574 = vmatprep.subr.bf16.mxu0 0
        %575 = vmatpush2.bf16.msra.mxu0 0
        %576 = vmatprep.subr.bf16.mxu0 0
        %577 = vmatpush2.bf16.msra.mxu0 0
        %578 = vmatprep.subr.bf16.mxu0 0
        %579 = vmatpush2.bf16.msra.mxu0 0
        %580 = vmatprep.subr.bf16.mxu0 0
        %581 = vmatpush2.bf16.msra.mxu0 0
        %582 = vmatprep.subr.bf16.mxu0 0
        %583 = vmatpush2.bf16.msra.mxu0 0
        %584 = vmatprep.mubr.bf16.mxu0 0
        %585 = vmatmul.mubr.bf16.gmra.mxu0 %v550
        %v586 = vpop.f32.mrf.mxu0
        %v587 = vadd.f32 %v523, %v586
        %v588 = vpop.f32.mrf.mxu0
        %v589 = vpop.f32.mrf.mxu0
        %v590 = vpop.f32.mrf.mxu0
        %591 = vdwg.mxu0
        %v592 = vpack.c.bf16 %v587, %v587
        %v593 = vld [vmem:[%s6] sm:$0xf]
        %v594 = vld [vmem:[%s6 + $0x4] sm:$0xf]
        %v595 = vld [vmem:[%s7] sm:$0x1]
        %v597 = vlaneseq
        %v598 = vshrl.u32 %v597, 7
        %v599 = vsub.s32 0, %v598
        %v600 = vrot.slane %v595, %v599
        %v604 = vunpack.c.l.b16 %v593
        %v605 = vunpack.c.l.b16 %v594
        %v606 = vpack.c.b16 %v605, %v604
        %vm608 = vcmask 130048
        %v610 = vsel %vm608, %v592, 0
        %612 = vmatprep.subr.bf16.mxu0 0
        %613 = vmatpush1.bf16.msra.mxu0 0
        %614 = vmatprep.subr.bf16.mxu0 0
        %615 = vmatpush1.bf16.msra.mxu0 0
        %616 = vmatprep.subr.bf16.mxu0 0
        %617 = vmatpush1.bf16.msra.mxu0 0
        %618 = vmatprep.subr.bf16.mxu0 0
        %619 = vmatpush1.bf16.msra.mxu0 0
        %620 = vmatprep.subr.bf16.mxu0 0
        %621 = vmatpush1.bf16.msra.mxu0 0
        %622 = vmatprep.subr.bf16.mxu0 0
        %623 = vmatpush1.bf16.msra.mxu0 0
        %624 = vmatprep.subr.bf16.mxu0 0
        %625 = vmatpush1.bf16.msra.mxu0 0
        %626 = vmatprep.subr.bf16.mxu0 0
        %627 = vmatpush1.bf16.msra.mxu0 %v606
        %628 = vmatprep.subr.bf16.mxu0 0
        %629 = vmatpush2.bf16.msra.mxu0 0
        %630 = vmatprep.subr.bf16.mxu0 0
        %631 = vmatpush2.bf16.msra.mxu0 0
        %632 = vmatprep.subr.bf16.mxu0 0
        %633 = vmatpush2.bf16.msra.mxu0 0
        %634 = vmatprep.subr.bf16.mxu0 0
        %635 = vmatpush2.bf16.msra.mxu0 0
        %636 = vmatprep.subr.bf16.mxu0 0
        %637 = vmatpush2.bf16.msra.mxu0 0
        %638 = vmatprep.subr.bf16.mxu0 0
        %639 = vmatpush2.bf16.msra.mxu0 0
        %640 = vmatprep.subr.bf16.mxu0 0
        %641 = vmatpush2.bf16.msra.mxu0 0
        %642 = vmatprep.subr.bf16.mxu0 0
        %643 = vmatpush2.bf16.msra.mxu0 0
        %644 = vmatprep.mubr.bf16.mxu0 0
        %645 = vmatmul.mubr.bf16.gmra.mxu0 %v610
        %v646 = vpop.f32.mrf.mxu0
        %v647 = vadd.f32 %v600, %v646
        %v648 = vpop.f32.mrf.mxu0
        %v649 = vpop.f32.mrf.mxu0
        %v650 = vpop.f32.mrf.mxu0
        %651 = vdwg.mxu0
        %v652 = vld [vmem:[%s8] sm:$0xf]
        %v653 = vld [vmem:[%s8 + $0x4] sm:$0xf]
        %v654 = vld [vmem:[%s8 + $0x8] sm:$0xf]
        %v655 = vld [vmem:[%s8 + $0xc] sm:$0xf]
        %v656 = vld [vmem:[%s8 + $0x10] sm:$0xf]
        %v657 = vld [vmem:[%s8 + $0x14] sm:$0xf]
        %v658 = vld [vmem:[%s8 + $0x18] sm:$0xf]
        %v659 = vld [vmem:[%s8 + $0x1c] sm:$0xf]
        %v660 = vld [vmem:[%s9] sm:$0x1]
        %v662 = vlaneseq
        %v663 = vshrl.u32 %v662, 7
        %v664 = vsub.s32 0, %v663
        %v665 = vrot.slane %v660, %v664
        %v675 = vunpack.c.l.b16 %v652
        %v676 = vunpack.c.l.b16 %v653
        %v677 = vunpack.c.l.b16 %v654
        %v678 = vunpack.c.l.b16 %v655
        %v679 = vunpack.c.l.b16 %v656
        %v680 = vunpack.c.l.b16 %v657
        %v681 = vunpack.c.l.b16 %v658
        %v682 = vunpack.c.l.b16 %v659
        %v683 = vpack.c.b16 %v676, %v675
        %v684 = vpack.c.b16 %v678, %v677
        %v685 = vpack.c.b16 %v680, %v679
        %v686 = vpack.c.b16 %v682, %v681
        %691 = vmatprep.subr.bf16.mxu0 0
        %692 = vmatpush1.bf16.msra.mxu0 0
        %693 = vmatprep.subr.bf16.mxu0 0
        %694 = vmatpush1.bf16.msra.mxu0 0
        %695 = vmatprep.subr.bf16.mxu0 0
        %696 = vmatpush1.bf16.msra.mxu0 0
        %697 = vmatprep.subr.bf16.mxu0 0
        %698 = vmatpush1.bf16.msra.mxu0 0
        %699 = vmatprep.subr.bf16.mxu0 0
        %700 = vmatpush1.bf16.msra.mxu0 %v686
        %701 = vmatprep.subr.bf16.mxu0 0
        %702 = vmatpush1.bf16.msra.mxu0 %v685
        %703 = vmatprep.subr.bf16.mxu0 0
        %704 = vmatpush1.bf16.msra.mxu0 %v684
        %705 = vmatprep.subr.bf16.mxu0 0
        %706 = vmatpush1.bf16.msra.mxu0 %v683
        %707 = vmatprep.subr.bf16.mxu0 0
        %708 = vmatpush2.bf16.msra.mxu0 0
        %709 = vmatprep.subr.bf16.mxu0 0
        %710 = vmatpush2.bf16.msra.mxu0 0
        %711 = vmatprep.subr.bf16.mxu0 0
        %712 = vmatpush2.bf16.msra.mxu0 0
        %713 = vmatprep.subr.bf16.mxu0 0
        %714 = vmatpush2.bf16.msra.mxu0 0
        %715 = vmatprep.subr.bf16.mxu0 0
        %716 = vmatpush2.bf16.msra.mxu0 0
        %717 = vmatprep.subr.bf16.mxu0 0
        %718 = vmatpush2.bf16.msra.mxu0 0
        %719 = vmatprep.subr.bf16.mxu0 0
        %720 = vmatpush2.bf16.msra.mxu0 0
        %721 = vmatprep.subr.bf16.mxu0 0
        %722 = vmatpush2.bf16.msra.mxu0 0
        %723 = vmatprep.mubr.bf16.mxu0 0
        %724 = vmatmul.mubr.bf16.gmra.mxu0 %v550
        %v725 = vpop.f32.mrf.mxu0
        %v726 = vadd.f32 %v665, %v725
        %v727 = vpop.f32.mrf.mxu0
        %v728 = vpop.f32.mrf.mxu0
        %v729 = vpop.f32.mrf.mxu0
        %730 = vdwg.mxu0
        %v731 = vpack.c.bf16 %v726, %v726
        %v732 = vld [vmem:[%s10] sm:$0xf]
        %v733 = vld [vmem:[%s10 + $0x4] sm:$0xf]
        %v734 = vld [vmem:[%s10 + $0x8] sm:$0xf]
        %v735 = vld [vmem:[%s10 + $0xc] sm:$0xf]
        %v736 = vld [vmem:[%s11] sm:$0x1]
        %v738 = vlaneseq
        %v739 = vshrl.u32 %v738, 7
        %v740 = vsub.s32 0, %v739
        %v741 = vrot.slane %v736, %v740
        %v747 = vunpack.c.l.b16 %v732
        %v748 = vunpack.c.l.b16 %v733
        %v749 = vunpack.c.l.b16 %v734
        %v750 = vunpack.c.l.b16 %v735
        %v751 = vpack.c.b16 %v748, %v747
        %v752 = vpack.c.b16 %v750, %v749
        %vm755 = vcmask 261120
        %v757 = vsel %vm755, %v731, 0
        %759 = vmatprep.subr.bf16.mxu0 0
        %760 = vmatpush1.bf16.msra.mxu0 0
        %761 = vmatprep.subr.bf16.mxu0 0
        %762 = vmatpush1.bf16.msra.mxu0 0
        %763 = vmatprep.subr.bf16.mxu0 0
        %764 = vmatpush1.bf16.msra.mxu0 0
        %765 = vmatprep.subr.bf16.mxu0 0
        %766 = vmatpush1.bf16.msra.mxu0 0
        %767 = vmatprep.subr.bf16.mxu0 0
        %768 = vmatpush1.bf16.msra.mxu0 0
        %769 = vmatprep.subr.bf16.mxu0 0
        %770 = vmatpush1.bf16.msra.mxu0 0
        %771 = vmatprep.subr.bf16.mxu0 0
        %772 = vmatpush1.bf16.msra.mxu0 %v752
        %773 = vmatprep.subr.bf16.mxu0 0
        %774 = vmatpush1.bf16.msra.mxu0 %v751
        %775 = vmatprep.subr.bf16.mxu0 0
        %776 = vmatpush2.bf16.msra.mxu0 0
        %777 = vmatprep.subr.bf16.mxu0 0
        %778 = vmatpush2.bf16.msra.mxu0 0
        %779 = vmatprep.subr.bf16.mxu0 0
        %780 = vmatpush2.bf16.msra.mxu0 0
        %781 = vmatprep.subr.bf16.mxu0 0
        %782 = vmatpush2.bf16.msra.mxu0 0
        %783 = vmatprep.subr.bf16.mxu0 0
        %784 = vmatpush2.bf16.msra.mxu0 0
        %785 = vmatprep.subr.bf16.mxu0 0
        %786 = vmatpush2.bf16.msra.mxu0 0
        %787 = vmatprep.subr.bf16.mxu0 0
        %788 = vmatpush2.bf16.msra.mxu0 0
        %789 = vmatprep.subr.bf16.mxu0 0
        %790 = vmatpush2.bf16.msra.mxu0 0
        %791 = vmatprep.mubr.bf16.mxu0 0
        %792 = vmatmul.mubr.bf16.gmra.mxu0 %v757
        %v793 = vpop.f32.mrf.mxu0
        %v794 = vadd.f32 %v741, %v793
        %v795 = vpop.f32.mrf.mxu0
        %v796 = vpop.f32.mrf.mxu0
        %v797 = vpop.f32.mrf.mxu0
        %798 = vdwg.mxu0
        %v799 = vld [vmem:[%s1] sm:$0xff]
        %v800 = vld [vmem:[#allocation2] sm:$0xff]
        %v801 = vsub.f32 0.0, %v726
        %803 = vrot.lane.b32.xlu0 %v801, 88
        %v804 = vpop.permute.xlu0 %803
        %807 = vrot.lane.b32.xlu0 %v726, 104
        %v808 = vpop.permute.xlu0 %807
        %vm810 = vcmask 64512
        %v811 = vsel %vm810, %v804, %v808
        %813 = vrot.lane.b32.xlu0 %v799, 32
        %v814 = vpop.permute.xlu0 %813
        %v816 = vmul.f32 %v726, %v814
        %v817 = vmul.f32 %v811, %v800
        %819 = vrot.lane.b32.xlu0 %v817, 32
        %v820 = vpop.permute.xlu0 %819
        %v822 = vadd.f32 %v816, %v820
        %v823 = vsub.f32 0.0, %v647
        %825 = vrot.lane.b32.xlu0 %v823, 104
        %v826 = vpop.permute.xlu0 %825
        %829 = vrot.lane.b32.xlu0 %v647, 120
        %v830 = vpop.permute.xlu0 %829
        %v832 = vsel %vm810, %v826, %v830
        %833 = vrot.lane.b32.xlu0 %v799, 16
        %v834 = vpop.permute.xlu0 %833
        %v836 = vmul.f32 %v647, %v834
        %v837 = vmul.f32 %v832, %v800
        %839 = vrot.lane.b32.xlu0 %v837, 16
        %v840 = vpop.permute.xlu0 %839
        %v842 = vadd.f32 %v836, %v840
        %v843 = vsel %vm608, %v647, %v842
        %845 = vrot.lane.b32.xlu0 %v822, 112
        %v846 = vpop.permute.xlu0 %845
        %v848 = vsel %vm608, %v794, %v846
        %v850 = vsel %vm755, %v843, 0
        %v853 = vsel %vm755, %v848, 0
        %855 = vmatprep.subr.mxu0 0.0
        %856 = vmatpush1.xpose.msra.mxu0 0.0
        %857 = vmatprep.subr.mxu0 0.0
        %858 = vmatpush1.xpose.msra.mxu0 0.0
        %859 = vmatprep.subr.mxu0 0.0
        %860 = vmatpush1.xpose.msra.mxu0 0.0
        %861 = vmatprep.subr.mxu0 0.0
        %862 = vmatpush1.xpose.msra.mxu0 0.0
        %863 = vmatprep.subr.mxu0 0.0
        %864 = vmatpush1.xpose.msra.mxu0 0.0
        %865 = vmatprep.subr.mxu0 0.0
        %866 = vmatpush1.xpose.msra.mxu0 0.0
        %867 = vmatprep.subr.mxu0 0.0
        %868 = vmatpush1.xpose.msra.mxu0 0.0
        %869 = vmatprep.subr.mxu0 0.0
        %870 = vmatpush1.xpose.msra.mxu0 0.0
        %871 = vmatprep.subr.mxu0 0.0
        %872 = vmatpush1.xpose.msra.mxu0 0.0
        %873 = vmatprep.subr.mxu0 0.0
        %874 = vmatpush1.xpose.msra.mxu0 0.0
        %875 = vmatprep.subr.mxu0 0.0
        %876 = vmatpush1.xpose.msra.mxu0 0.0
        %877 = vmatprep.subr.mxu0 0.0
        %878 = vmatpush1.xpose.msra.mxu0 0.0
        %879 = vmatprep.subr.mxu0 0.0
        %880 = vmatpush1.xpose.msra.mxu0 0.0
        %881 = vmatprep.subr.mxu0 0.0
        %882 = vmatpush1.xpose.msra.mxu0 0.0
        %883 = vmatprep.subr.mxu0 0.0
        %884 = vmatpush1.xpose.msra.mxu0 0.0
        %885 = vmatprep.subr.mxu0 0.0
        %886 = vmatpush1.xpose.msra.mxu0 %v853
        %887 = vmatprep.subr.mxu0 0.0
        %888 = vmatpush2.xpose.msra.mxu0 0.0
        %889 = vmatprep.subr.mxu0 0.0
        %890 = vmatpush2.xpose.msra.mxu0 0.0
        %891 = vmatprep.subr.mxu0 0.0
        %892 = vmatpush2.xpose.msra.mxu0 0.0
        %893 = vmatprep.subr.mxu0 0.0
        %894 = vmatpush2.xpose.msra.mxu0 0.0
        %895 = vmatprep.subr.mxu0 0.0
        %896 = vmatpush2.xpose.msra.mxu0 0.0
        %897 = vmatprep.subr.mxu0 0.0
        %898 = vmatpush2.xpose.msra.mxu0 0.0
        %899 = vmatprep.subr.mxu0 0.0
        %900 = vmatpush2.xpose.msra.mxu0 0.0
        %901 = vmatprep.subr.mxu0 0.0
        %902 = vmatpush2.xpose.msra.mxu0 0.0
        %903 = vmatprep.subr.mxu0 0.0
        %904 = vmatpush2.xpose.msra.mxu0 0.0
        %905 = vmatprep.subr.mxu0 0.0
        %906 = vmatpush2.xpose.msra.mxu0 0.0
        %907 = vmatprep.subr.mxu0 0.0
        %908 = vmatpush2.xpose.msra.mxu0 0.0
        %909 = vmatprep.subr.mxu0 0.0
        %910 = vmatpush2.xpose.msra.mxu0 0.0
        %911 = vmatprep.subr.mxu0 0.0
        %912 = vmatpush2.xpose.msra.mxu0 0.0
        %913 = vmatprep.subr.mxu0 0.0
        %914 = vmatpush2.xpose.msra.mxu0 0.0
        %915 = vmatprep.subr.mxu0 0.0
        %916 = vmatpush2.xpose.msra.mxu0 0.0
        %917 = vmatprep.subr.mxu0 0.0
        %918 = vmatpush2.xpose.msra.mxu0 0.0
        %919 = vmatprep.mubr.f32.mxu0 0.0
        %920 = vmatmul.mubr.f32.gmra.mxu0 %v850
        %v921 = vpop.f32.mrf.mxu0
        %v922 = vadd.f32 0.0, %v921
        %v923 = vpop.f32.mrf.mxu0
        %924 = vdwg.mxu0
        %v925 = vmul.f32 %v922, 0.17677669
        %v926 = vsel %vm810, %v925, -inf
        %927 = vmax.xlane.f32.xlu0 %v926
        %v928 = vpop.xlane.xlu0 %927
        %v929 = vsub.f32 %v925, %v928
        %v930 = vmul.f32 %v929, 1.442695
        %v931 = vpow.pop %v930
        %v932 = vsel %vm810, %v931, 0.0
        %933 = vadd.xlane.f32.xlu0 %v932
        %v934 = vpop.xlane.xlu0 %933
        %v935 = vrcp.pop %v934
        %v936 = vmul.f32 %v931, %v935
        %938 = vrot.lane.b32.xlu0 %v794, 112
        %v939 = vpop.permute.xlu0 %938
        %v942 = vsel %vm810, %v936, 0
        %944 = vmatprep.subr.mxu0 0.0
        %945 = vmatpush1.msra.mxu0 0.0
        %946 = vmatprep.subr.mxu0 0.0
        %947 = vmatpush1.msra.mxu0 0.0
        %948 = vmatprep.subr.mxu0 0.0
        %949 = vmatpush1.msra.mxu0 0.0
        %950 = vmatprep.subr.mxu0 0.0
        %951 = vmatpush1.msra.mxu0 0.0
        %952 = vmatprep.subr.mxu0 0.0
        %953 = vmatpush1.msra.mxu0 0.0
        %954 = vmatprep.subr.mxu0 0.0
        %955 = vmatpush1.msra.mxu0 0.0
        %956 = vmatprep.subr.mxu0 0.0
        %957 = vmatpush1.msra.mxu0 0.0
        %958 = vmatprep.subr.mxu0 0.0
        %959 = vmatpush1.msra.mxu0 0.0
        %960 = vmatprep.subr.mxu0 0.0
        %961 = vmatpush1.msra.mxu0 0.0
        %962 = vmatprep.subr.mxu0 0.0
        %963 = vmatpush1.msra.mxu0 0.0
        %964 = vmatprep.subr.mxu0 0.0
        %965 = vmatpush1.msra.mxu0 0.0
        %966 = vmatprep.subr.mxu0 0.0
        %967 = vmatpush1.msra.mxu0 0.0
        %968 = vmatprep.subr.mxu0 0.0
        %969 = vmatpush1.msra.mxu0 0.0
        %970 = vmatprep.subr.mxu0 0.0
        %971 = vmatpush1.msra.mxu0 0.0
        %972 = vmatprep.subr.mxu0 0.0
        %973 = vmatpush1.msra.mxu0 0.0
        %974 = vmatprep.subr.mxu0 0.0
        %975 = vmatpush1.msra.mxu0 %v939
        %976 = vmatprep.subr.mxu0 0.0
        %977 = vmatpush2.msra.mxu0 0.0
        %978 = vmatprep.subr.mxu0 0.0
        %979 = vmatpush2.msra.mxu0 0.0
        %980 = vmatprep.subr.mxu0 0.0
        %981 = vmatpush2.msra.mxu0 0.0
        %982 = vmatprep.subr.mxu0 0.0
        %983 = vmatpush2.msra.mxu0 0.0
        %984 = vmatprep.subr.mxu0 0.0
        %985 = vmatpush2.msra.mxu0 0.0
        %986 = vmatprep.subr.mxu0 0.0
        %987 = vmatpush2.msra.mxu0 0.0
        %988 = vmatprep.subr.mxu0 0.0
        %989 = vmatpush2.msra.mxu0 0.0
        %990 = vmatprep.subr.mxu0 0.0
        %991 = vmatpush2.msra.mxu0 0.0
        %992 = vmatprep.subr.mxu0 0.0
        %993 = vmatpush2.msra.mxu0 0.0
        %994 = vmatprep.subr.mxu0 0.0
        %995 = vmatpush2.msra.mxu0 0.0
        %996 = vmatprep.subr.mxu0 0.0
        %997 = vmatpush2.msra.mxu0 0.0
        %998 = vmatprep.subr.mxu0 0.0
        %999 = vmatpush2.msra.mxu0 0.0
        %1000 = vmatprep.subr.mxu0 0.0
        %1001 = vmatpush2.msra.mxu0 0.0
        %1002 = vmatprep.subr.mxu0 0.0
        %1003 = vmatpush2.msra.mxu0 0.0
        %1004 = vmatprep.subr.mxu0 0.0
        %1005 = vmatpush2.msra.mxu0 0.0
        %1006 = vmatprep.subr.mxu0 0.0
        %1007 = vmatpush2.msra.mxu0 0.0
        %1008 = vmatprep.mubr.f32.mxu0 0.0
        %1009 = vmatmul.mubr.f32.gmra.mxu0 %v942
        %v1010 = vpop.f32.mrf.mxu0
        %v1011 = vadd.f32 0.0, %v1010
        %v1012 = vpop.f32.mrf.mxu0
        %1013 = vdwg.mxu0
        %1014 = vrot.lane.b32.xlu0 %v823, 72
        %v1015 = vpop.permute.xlu0 %1014
        %1017 = vrot.lane.b32.xlu0 %v647, 88
        %v1018 = vpop.permute.xlu0 %1017
        %v1020 = vsel %vm810, %v1015, %v1018
        %1021 = vrot.lane.b32.xlu0 %v799, 48
        %v1022 = vpop.permute.xlu0 %1021
        %v1024 = vmul.f32 %v647, %v1022
        %v1025 = vmul.f32 %v1020, %v800
        %1027 = vrot.lane.b32.xlu0 %v1025, 48
        %v1028 = vpop.permute.xlu0 %1027
        %v1030 = vadd.f32 %v1024, %v1028
        %1031 = vrot.lane.b32.xlu0 %v647, 96
        %v1032 = vpop.permute.xlu0 %1031
        %1035 = vrot.lane.b32.xlu0 %v1030, 96
        %v1036 = vpop.permute.xlu0 %1035
        %v1038 = vsel %vm608, %v1032, %v1036
        %1039 = vrot.lane.b32.xlu0 %v794, 80
        %v1040 = vpop.permute.xlu0 %1039
        %v1042 = vsel %vm608, %v1040, %v846
        %v1044 = vsel %vm755, %v1038, 0
        %v1047 = vsel %vm755, %v1042, 0
        %1049 = vmatprep.subr.mxu0 0.0
        %1050 = vmatpush1.xpose.msra.mxu0 0.0
        %1051 = vmatprep.subr.mxu0 0.0
        %1052 = vmatpush1.xpose.msra.mxu0 0.0
        %1053 = vmatprep.subr.mxu0 0.0
        %1054 = vmatpush1.xpose.msra.mxu0 0.0
        %1055 = vmatprep.subr.mxu0 0.0
        %1056 = vmatpush1.xpose.msra.mxu0 0.0
        %1057 = vmatprep.subr.mxu0 0.0
        %1058 = vmatpush1.xpose.msra.mxu0 0.0
        %1059 = vmatprep.subr.mxu0 0.0
        %1060 = vmatpush1.xpose.msra.mxu0 0.0
        %1061 = vmatprep.subr.mxu0 0.0
        %1062 = vmatpush1.xpose.msra.mxu0 0.0
        %1063 = vmatprep.subr.mxu0 0.0
        %1064 = vmatpush1.xpose.msra.mxu0 0.0
        %1065 = vmatprep.subr.mxu0 0.0
        %1066 = vmatpush1.xpose.msra.mxu0 0.0
        %1067 = vmatprep.subr.mxu0 0.0
        %1068 = vmatpush1.xpose.msra.mxu0 0.0
        %1069 = vmatprep.subr.mxu0 0.0
        %1070 = vmatpush1.xpose.msra.mxu0 0.0
        %1071 = vmatprep.subr.mxu0 0.0
        %1072 = vmatpush1.xpose.msra.mxu0 0.0
        %1073 = vmatprep.subr.mxu0 0.0
        %1074 = vmatpush1.xpose.msra.mxu0 0.0
        %1075 = vmatprep.subr.mxu0 0.0
        %1076 = vmatpush1.xpose.msra.mxu0 0.0
        %1077 = vmatprep.subr.mxu0 0.0
        %1078 = vmatpush1.xpose.msra.mxu0 0.0
        %1079 = vmatprep.subr.mxu0 0.0
        %1080 = vmatpush1.xpose.msra.mxu0 %v1047
        %1081 = vmatprep.subr.mxu0 0.0
        %1082 = vmatpush2.xpose.msra.mxu0 0.0
        %1083 = vmatprep.subr.mxu0 0.0
        %1084 = vmatpush2.xpose.msra.mxu0 0.0
        %1085 = vmatprep.subr.mxu0 0.0
        %1086 = vmatpush2.xpose.msra.mxu0 0.0
        %1087 = vmatprep.subr.mxu0 0.0
        %1088 = vmatpush2.xpose.msra.mxu0 0.0
        %1089 = vmatprep.subr.mxu0 0.0
        %1090 = vmatpush2.xpose.msra.mxu0 0.0
        %1091 = vmatprep.subr.mxu0 0.0
        %1092 = vmatpush2.xpose.msra.mxu0 0.0
        %1093 = vmatprep.subr.mxu0 0.0
        %1094 = vmatpush2.xpose.msra.mxu0 0.0
        %1095 = vmatprep.subr.mxu0 0.0
        %1096 = vmatpush2.xpose.msra.mxu0 0.0
        %1097 = vmatprep.subr.mxu0 0.0
        %1098 = vmatpush2.xpose.msra.mxu0 0.0
        %1099 = vmatprep.subr.mxu0 0.0
        %1100 = vmatpush2.xpose.msra.mxu0 0.0
        %1101 = vmatprep.subr.mxu0 0.0
        %1102 = vmatpush2.xpose.msra.mxu0 0.0
        %1103 = vmatprep.subr.mxu0 0.0
        %1104 = vmatpush2.xpose.msra.mxu0 0.0
        %1105 = vmatprep.subr.mxu0 0.0
        %1106 = vmatpush2.xpose.msra.mxu0 0.0
        %1107 = vmatprep.subr.mxu0 0.0
        %1108 = vmatpush2.xpose.msra.mxu0 0.0
        %1109 = vmatprep.subr.mxu0 0.0
        %1110 = vmatpush2.xpose.msra.mxu0 0.0
        %1111 = vmatprep.subr.mxu0 0.0
        %1112 = vmatpush2.xpose.msra.mxu0 0.0
        %1113 = vmatprep.mubr.f32.mxu0 0.0
        %1114 = vmatmul.mubr.f32.gmra.mxu0 %v1044
        %v1115 = vpop.f32.mrf.mxu0
        %v1116 = vadd.f32 0.0, %v1115
        %v1117 = vpop.f32.mrf.mxu0
        %1118 = vdwg.mxu0
        %v1119 = vmul.f32 %v1116, 0.17677669
        %v1120 = vsel %vm810, %v1119, -inf
        %1121 = vmax.xlane.f32.xlu0 %v1120
        %v1122 = vpop.xlane.xlu0 %1121
        %v1123 = vsub.f32 %v1119, %v1122
        %v1124 = vmul.f32 %v1123, 1.442695
        %v1125 = vpow.pop %v1124
        %v1126 = vsel %vm810, %v1125, 0.0
        %1127 = vadd.xlane.f32.xlu0 %v1126
        %v1128 = vpop.xlane.xlu0 %1127
        %v1129 = vrcp.pop %v1128
        %v1130 = vmul.f32 %v1125, %v1129
        %1131 = vrot.lane.b32.xlu0 %v794, 64
        %v1132 = vpop.permute.xlu0 %1131
        %v1135 = vsel %vm810, %v1130, 0
        %1137 = vmatprep.subr.mxu0 0.0
        %1138 = vmatpush1.msra.mxu0 0.0
        %1139 = vmatprep.subr.mxu0 0.0
        %1140 = vmatpush1.msra.mxu0 0.0
        %1141 = vmatprep.subr.mxu0 0.0
        %1142 = vmatpush1.msra.mxu0 0.0
        %1143 = vmatprep.subr.mxu0 0.0
        %1144 = vmatpush1.msra.mxu0 0.0
        %1145 = vmatprep.subr.mxu0 0.0
        %1146 = vmatpush1.msra.mxu0 0.0
        %1147 = vmatprep.subr.mxu0 0.0
        %1148 = vmatpush1.msra.mxu0 0.0
        %1149 = vmatprep.subr.mxu0 0.0
        %1150 = vmatpush1.msra.mxu0 0.0
        %1151 = vmatprep.subr.mxu0 0.0
        %1152 = vmatpush1.msra.mxu0 0.0
        %1153 = vmatprep.subr.mxu0 0.0
        %1154 = vmatpush1.msra.mxu0 0.0
        %1155 = vmatprep.subr.mxu0 0.0
        %1156 = vmatpush1.msra.mxu0 0.0
        %1157 = vmatprep.subr.mxu0 0.0
        %1158 = vmatpush1.msra.mxu0 0.0
        %1159 = vmatprep.subr.mxu0 0.0
        %1160 = vmatpush1.msra.mxu0 0.0
        %1161 = vmatprep.subr.mxu0 0.0
        %1162 = vmatpush1.msra.mxu0 0.0
        %1163 = vmatprep.subr.mxu0 0.0
        %1164 = vmatpush1.msra.mxu0 0.0
        %1165 = vmatprep.subr.mxu0 0.0
        %1166 = vmatpush1.msra.mxu0 0.0
        %1167 = vmatprep.subr.mxu0 0.0
        %1168 = vmatpush1.msra.mxu0 %v1132
        %1169 = vmatprep.subr.mxu0 0.0
        %1170 = vmatpush2.msra.mxu0 0.0
        %1171 = vmatprep.subr.mxu0 0.0
        %1172 = vmatpush2.msra.mxu0 0.0
        %1173 = vmatprep.subr.mxu0 0.0
        %1174 = vmatpush2.msra.mxu0 0.0
        %1175 = vmatprep.subr.mxu0 0.0
        %1176 = vmatpush2.msra.mxu0 0.0
        %1177 = vmatprep.subr.mxu0 0.0
        %1178 = vmatpush2.msra.mxu0 0.0
        %1179 = vmatprep.subr.mxu0 0.0
        %1180 = vmatpush2.msra.mxu0 0.0
        %1181 = vmatprep.subr.mxu0 0.0
        %1182 = vmatpush2.msra.mxu0 0.0
        %1183 = vmatprep.subr.mxu0 0.0
        %1184 = vmatpush2.msra.mxu0 0.0
        %1185 = vmatprep.subr.mxu0 0.0
        %1186 = vmatpush2.msra.mxu0 0.0
        %1187 = vmatprep.subr.mxu0 0.0
        %1188 = vmatpush2.msra.mxu0 0.0
        %1189 = vmatprep.subr.mxu0 0.0
        %1190 = vmatpush2.msra.mxu0 0.0
        %1191 = vmatprep.subr.mxu0 0.0
        %1192 = vmatpush2.msra.mxu0 0.0
        %1193 = vmatprep.subr.mxu0 0.0
        %1194 = vmatpush2.msra.mxu0 0.0
        %1195 = vmatprep.subr.mxu0 0.0
        %1196 = vmatpush2.msra.mxu0 0.0
        %1197 = vmatprep.subr.mxu0 0.0
        %1198 = vmatpush2.msra.mxu0 0.0
        %1199 = vmatprep.subr.mxu0 0.0
        %1200 = vmatpush2.msra.mxu0 0.0
        %1201 = vmatprep.mubr.f32.mxu0 0.0
        %1202 = vmatmul.mubr.f32.gmra.mxu0 %v1135
        %v1203 = vpop.f32.mrf.mxu0
        %v1204 = vadd.f32 0.0, %v1203
        %v1205 = vpop.f32.mrf.mxu0
        %1206 = vdwg.mxu0
        %1208 = vrot.lane.b32.xlu0 %v1204, 32
        %v1209 = vpop.permute.xlu0 %1208
        %v1211 = vsel %vm755, %v1011, %v1209
        %v1212 = vpack.c.bf16 %v1211, %v1211
        %v1213 = vld [vmem:[%s12] sm:$0xf]
        %v1214 = vld [vmem:[%s12 + $0x4] sm:$0xf]
        %v1215 = vld [vmem:[%s12 + $0x8] sm:$0xf]
        %v1216 = vld [vmem:[%s12 + $0xc] sm:$0xf]
        %v1217 = vld [vmem:[%s12 + $0x10] sm:$0xf]
        %v1218 = vld [vmem:[%s12 + $0x14] sm:$0xf]
        %v1219 = vld [vmem:[%s12 + $0x18] sm:$0xf]
        %v1220 = vld [vmem:[%s12 + $0x1c] sm:$0xf]
        %v1221 = vld [vmem:[%s13] sm:$0x1]
        %v1223 = vlaneseq
        %v1224 = vshrl.u32 %v1223, 7
        %v1225 = vsub.s32 0, %v1224
        %v1226 = vrot.slane %v1221, %v1225
        %v1236 = vunpack.c.l.b16 %v1213
        %v1237 = vunpack.c.l.b16 %v1214
        %v1238 = vunpack.c.l.b16 %v1215
        %v1239 = vunpack.c.l.b16 %v1216
        %v1240 = vunpack.c.l.b16 %v1217
        %v1241 = vunpack.c.l.b16 %v1218
        %v1242 = vunpack.c.l.b16 %v1219
        %v1243 = vunpack.c.l.b16 %v1220
        %v1244 = vpack.c.b16 %v1237, %v1236
        %v1245 = vpack.c.b16 %v1239, %v1238
        %v1246 = vpack.c.b16 %v1241, %v1240
        %v1247 = vpack.c.b16 %v1243, %v1242
        %v1253 = vsel %vm492, %v1212, 0
        %1255 = vmatprep.subr.bf16.mxu0 0
        %1256 = vmatpush1.bf16.msra.mxu0 0
        %1257 = vmatprep.subr.bf16.mxu0 0
        %1258 = vmatpush1.bf16.msra.mxu0 0
        %1259 = vmatprep.subr.bf16.mxu0 0
        %1260 = vmatpush1.bf16.msra.mxu0 0
        %1261 = vmatprep.subr.bf16.mxu0 0
        %1262 = vmatpush1.bf16.msra.mxu0 0
        %1263 = vmatprep.subr.bf16.mxu0 0
        %1264 = vmatpush1.bf16.msra.mxu0 %v1247
        %1265 = vmatprep.subr.bf16.mxu0 0
        %1266 = vmatpush1.bf16.msra.mxu0 %v1246
        %1267 = vmatprep.subr.bf16.mxu0 0
        %1268 = vmatpush1.bf16.msra.mxu0 %v1245
        %1269 = vmatprep.subr.bf16.mxu0 0
        %1270 = vmatpush1.bf16.msra.mxu0 %v1244
        %1271 = vmatprep.subr.bf16.mxu0 0
        %1272 = vmatpush2.bf16.msra.mxu0 0
        %1273 = vmatprep.subr.bf16.mxu0 0
        %1274 = vmatpush2.bf16.msra.mxu0 0
        %1275 = vmatprep.subr.bf16.mxu0 0
        %1276 = vmatpush2.bf16.msra.mxu0 0
        %1277 = vmatprep.subr.bf16.mxu0 0
        %1278 = vmatpush2.bf16.msra.mxu0 0
        %1279 = vmatprep.subr.bf16.mxu0 0
        %1280 = vmatpush2.bf16.msra.mxu0 0
        %1281 = vmatprep.subr.bf16.mxu0 0
        %1282 = vmatpush2.bf16.msra.mxu0 0
        %1283 = vmatprep.subr.bf16.mxu0 0
        %1284 = vmatpush2.bf16.msra.mxu0 0
        %1285 = vmatprep.subr.bf16.mxu0 0
        %1286 = vmatpush2.bf16.msra.mxu0 0
        %1287 = vmatprep.mubr.bf16.mxu0 0
        %1288 = vmatmul.mubr.bf16.gmra.mxu0 %v1253
        %v1289 = vpop.f32.mrf.mxu0
        %v1290 = vadd.f32 %v1226, %v1289
        %v1291 = vpop.f32.mrf.mxu0
        %v1292 = vpop.f32.mrf.mxu0
        %v1293 = vpop.f32.mrf.mxu0
        %1294 = vdwg.mxu0
        %v1295 = vadd.f32 %v490, %v1290
        %1296 = vst.msk [vmem:[%s484] sm:$0xff] %vm492, %v1295
        %s1297 = sand.u32 %s337, 1
        %s1298 = scalar_lea.sflag [#allocation4], %s1297
        %s1299 = sand.u32 %s337, 1
        %s1300 = smul.addr %s1299, 8
        %s1301 = scalar_lea.vmem [#allocation7], %s1300
        // Predicated region
        $region85: #{tpu_custom_call.1} parent=75 // pred_check
          %p1302 = pneg %p347
        $region86: #{tpu_custom_call.1} parent=75 // pred_check_branch
          %1304 = sbr.rel (%p1302) target = $region88
        $region87: #{tpu_custom_call.1} parent=75 // pred_region
          %s1306 = ssub.s32 128, 128
          %1307 = vsyncadd %s1298, %s1306
          %s1308 = smul.addr %s30, 128
          %s1309 = scalar_lea.hbm %s14, %s1308
          %s1311 = sshll.u32 %s1301, 4
          %s1312 = int_to_ptr.vmem [resolvable:$true] %s1311
          %1314 = dma.vmem_to_hbm [thread:$0]  %s1312, 128, %s1309, %s1298
        $region88: #{tpu_custom_call.1} parent=75 // pred_fallthru
          _
      $region76: #{tpu_custom_call.1} parent=5 // pred_fallthru
        _
      %p1315 = scmp.le.s32.totalorder 2, %s25
      // Predicated region
      $region89: #{tpu_custom_call.1} parent=5 // pred_check
        %p1316 = pneg %p1315
      $region90: #{tpu_custom_call.1} parent=5 // pred_check_branch
        %1318 = sbr.rel (%p1316) target = $region92
      $region91: #{tpu_custom_call.1} parent=5 // pred_region
        %s1319 = ssub.s32 %s25, 2
        // Predicated region
        $region93: #{tpu_custom_call.1} parent=91 // pred_check
          %p1320 = pneg %p353
        $region94: #{tpu_custom_call.1} parent=91 // pred_check_branch
          %1322 = sbr.rel (%p1320) target = $region96
        $region95: #{tpu_custom_call.1} parent=91 // pred_region
          %s1323 = sand.u32 %s338, 1
          %s1324 = scalar_lea.sflag [#allocation4], %s1323
          %s1325 = sand.u32 %s338, 1
          %s1326 = smul.addr %s1325, 8
          %s1327 = scalar_lea.vmem [#allocation7], %s1326
          %1328 = dma.done %s1324, 128
        $region96: #{tpu_custom_call.1} parent=91 // pred_fallthru
          _
      $region92: #{tpu_custom_call.1} parent=5 // pred_fallthru
        _
    $region6: #{tpu_custom_call.1} parent=1 // loop_footer
      %s29 = sadd.s32 1, %s25
    $region7: #{tpu_custom_call.1} parent=1 // loop_footer_branch
      %24 = sbr.rel target = $region3
    $region8: #{tpu_custom_call.1} parent=1 // loop_exit
      _
    %1329 = vsyncpa [#allocation3], 1
    %s1330 = scalar_lea.sflag [#allocation3], 1
    %1331 = vsyncpa %s1330, 1
    %1332 = vsyncpa [#allocation6], 1
    %1333 = vsyncpa [#allocation4], 1
    %s1334 = scalar_lea.sflag [#allocation4], 1
    %1335 = vsyncpa %s1334, 1

</llo_original>
